<compile_context>
chip_gen: v5e
topology: v5e:2x2
jax: 0.10.0
libtpu: 0.0.40
codegen_flags: <defaults>
</compile_context>

<pallas_src>
import jax
import jax.numpy as jnp
import numpy as np
from jax import lax
from jax.experimental import pallas as pl
from jax.experimental.pallas import tpu as pltpu

HI = lax.Precision.HIGHEST  # only used by the pure-JAX reference


def _make_resblock_kernel(Ho, Wo, Cin, Cout, stride):
    HW = Ho * Wo
    S = stride

    def kernel(x_ref, w01_ref, b1_ref, a1_ref, w2_ref, b2_ref,
               f1_ref, r1_ref, f2_ref, r2_ref, out_ref, padbuf):
        # x_ref : (1, Hph, Wph, S*S*Cin)  space-to-depth'd, zero-padded input
        # w01   : (9*Cin, 2*Cout)         fused [conv0 | conv1] weights (tap-major)
        # w2    : (9*Cout, Cout)          conv2 weights (tap-major)
        # b1,a1,b2,r2 : (1,Cout);  r1 : (1,1);  f1 : (Cout,16);  f2 : (16,Cout)
        xph = x_ref[0]                                    # (Hph, Wph, S*S*Cin)

        # ---- conv0 + conv1 (3x3, stride S, pad 1) as ONE deep-K matmul -----
        pieces = []
        for ky in range(3):
            for kx in range(3):
                ph = (ky % S) * S + (kx % S)              # phase block in depth
                oy, ox = ky // S, kx // S                 # offset inside phase
                patch = xph[oy:oy + Ho, ox:ox + Wo, ph * Cin:(ph + 1) * Cin]
                pieces.append(patch.reshape(HW, Cin))
        col = jnp.concatenate(pieces, axis=1)             # (HW, 9*Cin)
        fused = jnp.dot(col, w01_ref[...],
                        preferred_element_type=jnp.float32)   # (HW, 2*Cout)
        y = fused[:, :Cout]                               # shortcut (no bias)
        h = fused[:, Cout:] + b1_ref[...]                 # conv1 + bias
        h = jnp.where(h >= 0.0, h, a1_ref[...] * h)       # PReLU(out_planes)

        # ---- conv2 (3x3, stride 1, pad 1, bias, no act) --------------------
        # Zero only the 1-pixel border each step (interior is fully
        # overwritten); done per-step so it stays correct under megacore.
        padbuf[0, :, :] = jnp.zeros((Wo + 2, Cout), jnp.float32)
        padbuf[Ho + 1, :, :] = jnp.zeros((Wo + 2, Cout), jnp.float32)
        padbuf[:, 0, :] = jnp.zeros((Ho + 2, Cout), jnp.float32)
        padbuf[:, Wo + 1, :] = jnp.zeros((Ho + 2, Cout), jnp.float32)
        padbuf[1:Ho + 1, 1:Wo + 1, :] = h.reshape(Ho, Wo, Cout)

        pieces2 = []
        for ky in range(3):
            for kx in range(3):
                pieces2.append(
                    padbuf[ky:ky + Ho, kx:kx + Wo, :].reshape(HW, Cout))
        col2 = jnp.concatenate(pieces2, axis=1)           # (HW, 9*Cout)
        h2 = jnp.dot(col2, w2_ref[...],
                     preferred_element_type=jnp.float32) + b2_ref[...]

        # ---- squeeze-excite gate: mean -> fc1 -> PReLU(1) -> fc2 -> sigmoid
        wv = jnp.sum(h2, axis=0, keepdims=True) * (1.0 / HW)      # (1, Cout)
        wv8 = jnp.broadcast_to(wv, (8, Cout))             # pad M to a sublane tile
        t = jnp.dot(wv8, f1_ref[...], preferred_element_type=jnp.float32)
        t = jnp.where(t >= 0.0, t, r1_ref[...] * t)       # PReLU(1)
        g = jnp.dot(t, f2_ref[...], preferred_element_type=jnp.float32)
        g = jax.nn.sigmoid(g[0:1, :])                     # (1, Cout)

        # ---- residual combine + PReLU(out_planes) --------------------------
        z = h2 * g + y
        z = jnp.where(z >= 0.0, z, r2_ref[...] * z)
        out_ref[0] = z                                    # (HW, Cout)

    return kernel


def resblock_forward(x_nchw, params, stride=2):
    """ResBlock forward.  x_nchw: (N, Cin, H, W) f32 -> (N, Cout, Ho, Wo) f32."""
    N, Cin, H, W = x_nchw.shape
    Cout = params["w0"].shape[0]
    s = int(stride)
    Ho = (H + 2 - 3) // s + 1
    Wo = (W + 2 - 3) // s + 1
    HW = Ho * Wo

    # NCHW -> NHWC, zero pad by 1 (conv padding); pad up to a multiple of s.
    x = jnp.transpose(x_nchw, (0, 2, 3, 1)).astype(jnp.float32)
    Hp, Wp = H + 2, W + 2
    Hp2 = -(-Hp // s) * s
    Wp2 = -(-Wp // s) * s
    x = jnp.pad(x, ((0, 0), (1, 1 + Hp2 - Hp), (1, 1 + Wp2 - Wp), (0, 0)))

    # space-to-depth by the conv stride so every tap is a contiguous slice
    # inside the kernel (identity when s == 1).
    Hph, Wph = Hp2 // s, Wp2 // s
    xph = (x.reshape(N, Hph, s, Wph, s, Cin)
             .transpose(0, 1, 3, 2, 4, 5)
             .reshape(N, Hph, Wph, s * s * Cin))
    assert Hph >= Ho + 2 // s and Wph >= Wo + 2 // s

    # weights: OIHW -> HWIO, fuse conv0|conv1 along out channels, flatten taps.
    # TODO(synk): stride=1 with in_planes==out_planes uses an Identity shortcut
    # in the PyTorch module; this wrapper always applies conv0 weights.
    w0h = jnp.transpose(params["w0"], (2, 3, 1, 0))           # (3,3,Cin,Cout)
    w1h = jnp.transpose(params["w1"], (2, 3, 1, 0))
    w01 = jnp.concatenate([w0h, w1h], axis=-1).reshape(9 * Cin, 2 * Cout)
    w2f = jnp.transpose(params["w2"], (2, 3, 1, 0)).reshape(9 * Cout, Cout)
    b1 = params["b1"].reshape(1, Cout)
    b2 = params["b2"].reshape(1, Cout)
    a1 = params["a1"].reshape(1, Cout)
    r1 = params["r1"].reshape(1, 1)
    r2 = params["r2"].reshape(1, Cout)
    f1k = params["f1"][:, :, 0, 0].T                          # (Cout, 16)
    f2k = params["f2"][:, :, 0, 0].T                          # (16, Cout)
    Cmid = f1k.shape[1]

    kernel = _make_resblock_kernel(Ho, Wo, Cin, Cout, s)
    full = lambda n: (0, 0)
    out_flat = pl.pallas_call(
        kernel,
        out_shape=jax.ShapeDtypeStruct((N, HW, Cout), jnp.float32),
        grid=(N,),
        in_specs=[
            pl.BlockSpec((1, Hph, Wph, s * s * Cin), lambda n: (n, 0, 0, 0)),
            pl.BlockSpec((9 * Cin, 2 * Cout), full),          # w01
            pl.BlockSpec((1, Cout), full),                    # b1
            pl.BlockSpec((1, Cout), full),                    # a1
            pl.BlockSpec((9 * Cout, Cout), full),             # w2
            pl.BlockSpec((1, Cout), full),                    # b2
            pl.BlockSpec((Cout, Cmid), full),                 # f1
            pl.BlockSpec((1, 1), full),                       # r1
            pl.BlockSpec((Cmid, Cout), full),                 # f2
            pl.BlockSpec((1, Cout), full),                    # r2
        ],
        out_specs=pl.BlockSpec((1, HW, Cout), lambda n: (n, 0, 0)),
        scratch_shapes=[pltpu.VMEM((Ho + 2, Wo + 2, Cout), jnp.float32)],
        compiler_params=pltpu.CompilerParams(
            dimension_semantics=("parallel",),        # megacore on v7x
            vmem_limit_bytes=32 * 1024 * 1024,        # safe on v5e/v6e/v7x
        ),
    )(xph, w01, b1, a1, w2f, b2, f1k, r1, f2k, r2)

    out = out_flat.reshape(N, Ho, Wo, Cout)
    return jnp.transpose(out, (0, 3, 1, 2))


def resblock_reference(x, p, stride=2):
    """Pure-JAX NCHW reference matching the PyTorch forward exactly."""
    dn = ("NCHW", "OIHW", "NCHW")
    pad3 = [(1, 1), (1, 1)]
    y = lax.conv_general_dilated(x, p["w0"], (stride, stride), pad3,
                                 dimension_numbers=dn, precision=HI)
    h = lax.conv_general_dilated(x, p["w1"], (stride, stride), pad3,
                                 dimension_numbers=dn, precision=HI)
    h = h + p["b1"][None, :, None, None]
    h = jnp.where(h >= 0, h, p["a1"][None, :, None, None] * h)
    h2 = lax.conv_general_dilated(h, p["w2"], (1, 1), pad3,
                                  dimension_numbers=dn, precision=HI)
    h2 = h2 + p["b2"][None, :, None, None]
    w = h2.mean(axis=(2, 3), keepdims=True)
    w = lax.conv_general_dilated(w, p["f1"], (1, 1), [(0, 0), (0, 0)],
                                 dimension_numbers=dn, precision=HI)
    w = jnp.where(w >= 0, w, p["r1"] * w)
    w = lax.conv_general_dilated(w, p["f2"], (1, 1), [(0, 0), (0, 0)],
                                 dimension_numbers=dn, precision=HI)
    w = jax.nn.sigmoid(w)
    z = h2 * w + y
    z = jnp.where(z >= 0, z, p["r2"][None, :, None, None] * z)
    return z


def init_params(key, in_planes, out_planes):
    ks = jax.random.split(key, 8)
    f32 = jnp.float32
    return {
        "w0": 0.2 * jax.random.normal(ks[0], (out_planes, in_planes, 3, 3), f32),
        "w1": 0.2 * jax.random.normal(ks[1], (out_planes, in_planes, 3, 3), f32),
        "b1": 0.1 * jax.random.normal(ks[2], (out_planes,), f32),
        "a1": jnp.full((out_planes,), 0.25, f32),       # PReLU of conv1
        "w2": 0.2 * jax.random.normal(ks[3], (out_planes, out_planes, 3, 3), f32),
        "b2": 0.1 * jax.random.normal(ks[4], (out_planes,), f32),
        "r1": jnp.full((1,), 0.1, f32),                 # PReLU(1)
        "f1": 0.3 * jax.random.normal(ks[5], (16, out_planes, 1, 1), f32),
        "f2": 0.3 * jax.random.normal(ks[6], (out_planes, 16, 1, 1), f32),
        "r2": jnp.full((out_planes,), 0.3, f32),        # PReLU(out_planes)
    }


if __name__ == "__main__":
    key = jax.random.PRNGKey(0)
    k_x, k_p = jax.random.split(key)

    N, Cin, H, W = 2, 4, 16, 16
    Cout, stride = 8, 2

    x = jax.random.normal(k_x, (N, Cin, H, W), jnp.float32)
    params = init_params(k_p, Cin, Cout)

    out = jax.block_until_ready(resblock_forward(x, params, stride=stride))
    ref = jax.block_until_ready(resblock_reference(x, params, stride=stride))

    assert out.shape == ref.shape == (N, Cout, H // stride, W // stride), out.shape
    # Kernel uses default (bf16-pass) MXU precision vs an f32 HIGHEST reference,
    # so allow a bf16-level absolute tolerance on O(1)-scale activations.
    np.testing.assert_allclose(np.asarray(out), np.asarray(ref),
                               rtol=5e-2, atol=3e-2)
    print("KERNEL_OK")
</pallas_src>

<mosaic_0001>
module attributes {stable_mosaic.version = 11 : i64} {
  func.func @kernel(%arg0: i32, %arg1: memref<1x9x9x16xf32, #tpu.memory_space<vmem>>, %arg2: memref<36x16xf32, #tpu.memory_space<vmem>>, %arg3: memref<1x8xf32, #tpu.memory_space<vmem>>, %arg4: memref<1x8xf32, #tpu.memory_space<vmem>>, %arg5: memref<72x8xf32, #tpu.memory_space<vmem>>, %arg6: memref<1x8xf32, #tpu.memory_space<vmem>>, %arg7: memref<8x16xf32, #tpu.memory_space<vmem>>, %arg8: memref<1x1xf32, #tpu.memory_space<vmem>>, %arg9: memref<16x8xf32, #tpu.memory_space<vmem>>, %arg10: memref<1x8xf32, #tpu.memory_space<vmem>>, %arg11: memref<1x64x8xf32, #tpu.memory_space<vmem>>, %arg12: memref<10x10x8xf32, #tpu.memory_space<vmem>>) attributes {dimension_semantics = [#tpu.dimension_semantics<parallel>], iteration_bounds = array<i64: 2>, scalar_prefetch = 0 : i64, scratch_operands = 1 : i64, tpu.core_type = #tpu.core_type<tc>, window_params = [{transform_indices = @transform_0, window_bounds = array<i64: 1, 9, 9, 16>}, {pipeline_mode = #tpu.pipeline_mode<synchronous>, transform_indices = @transform_1, window_bounds = array<i64: 36, 16>}, {pipeline_mode = #tpu.pipeline_mode<synchronous>, transform_indices = @transform_2, window_bounds = array<i64: 1, 8>}, {pipeline_mode = #tpu.pipeline_mode<synchronous>, transform_indices = @transform_3, window_bounds = array<i64: 1, 8>}, {pipeline_mode = #tpu.pipeline_mode<synchronous>, transform_indices = @transform_4, window_bounds = array<i64: 72, 8>}, {pipeline_mode = #tpu.pipeline_mode<synchronous>, transform_indices = @transform_5, window_bounds = array<i64: 1, 8>}, {pipeline_mode = #tpu.pipeline_mode<synchronous>, transform_indices = @transform_6, window_bounds = array<i64: 8, 16>}, {pipeline_mode = #tpu.pipeline_mode<synchronous>, transform_indices = @transform_7, window_bounds = array<i64: 1, 1>}, {pipeline_mode = #tpu.pipeline_mode<synchronous>, transform_indices = @transform_8, window_bounds = array<i64: 16, 8>}, {pipeline_mode = #tpu.pipeline_mode<synchronous>, transform_indices = @transform_9, window_bounds = array<i64: 1, 8>}, {transform_indices = @transform_10, window_bounds = array<i64: 1, 64, 8>}]} {
    %c0 = arith.constant 0 : index
    %c0_0 = arith.constant 0 : index
    %c0_1 = arith.constant 0 : index
    %c0_2 = arith.constant 0 : index
    %0 = vector.load %arg1[%c0, %c0_0, %c0_1, %c0_2] : memref<1x9x9x16xf32, #tpu.memory_space<vmem>>, vector<1x9x9x16xf32>
    %1 = vector.shape_cast %0 : vector<1x9x9x16xf32> to vector<9x9x16xf32>
    %2 = vector.extract_strided_slice %1 {offsets = [0, 0, 0], sizes = [8, 8, 4], strides = [1, 1, 1]} : vector<9x9x16xf32> to vector<8x8x4xf32>
    %3 = vector.shape_cast %2 : vector<8x8x4xf32> to vector<64x4xf32>
    %4 = vector.extract_strided_slice %1 {offsets = [0, 0, 4], sizes = [8, 8, 4], strides = [1, 1, 1]} : vector<9x9x16xf32> to vector<8x8x4xf32>
    %5 = vector.shape_cast %4 : vector<8x8x4xf32> to vector<64x4xf32>
    %6 = vector.extract_strided_slice %1 {offsets = [0, 1, 0], sizes = [8, 8, 4], strides = [1, 1, 1]} : vector<9x9x16xf32> to vector<8x8x4xf32>
    %7 = vector.shape_cast %6 : vector<8x8x4xf32> to vector<64x4xf32>
    %8 = vector.extract_strided_slice %1 {offsets = [0, 0, 8], sizes = [8, 8, 4], strides = [1, 1, 1]} : vector<9x9x16xf32> to vector<8x8x4xf32>
    %9 = vector.shape_cast %8 : vector<8x8x4xf32> to vector<64x4xf32>
    %10 = vector.extract_strided_slice %1 {offsets = [0, 0, 12], sizes = [8, 8, 4], strides = [1, 1, 1]} : vector<9x9x16xf32> to vector<8x8x4xf32>
    %11 = vector.shape_cast %10 : vector<8x8x4xf32> to vector<64x4xf32>
    %12 = vector.extract_strided_slice %1 {offsets = [0, 1, 8], sizes = [8, 8, 4], strides = [1, 1, 1]} : vector<9x9x16xf32> to vector<8x8x4xf32>
    %13 = vector.shape_cast %12 : vector<8x8x4xf32> to vector<64x4xf32>
    %14 = vector.extract_strided_slice %1 {offsets = [1, 0, 0], sizes = [8, 8, 4], strides = [1, 1, 1]} : vector<9x9x16xf32> to vector<8x8x4xf32>
    %15 = vector.shape_cast %14 : vector<8x8x4xf32> to vector<64x4xf32>
    %16 = vector.extract_strided_slice %1 {offsets = [1, 0, 4], sizes = [8, 8, 4], strides = [1, 1, 1]} : vector<9x9x16xf32> to vector<8x8x4xf32>
    %17 = vector.shape_cast %16 : vector<8x8x4xf32> to vector<64x4xf32>
    %18 = vector.extract_strided_slice %1 {offsets = [1, 1, 0], sizes = [8, 8, 4], strides = [1, 1, 1]} : vector<9x9x16xf32> to vector<8x8x4xf32>
    %19 = vector.shape_cast %18 : vector<8x8x4xf32> to vector<64x4xf32>
    %20 = tpu.concatenate %3, %5, %7, %9, %11, %13, %15, %17, %19 in 1 : vector<64x4xf32>, vector<64x4xf32>, vector<64x4xf32>, vector<64x4xf32>, vector<64x4xf32>, vector<64x4xf32>, vector<64x4xf32>, vector<64x4xf32>, vector<64x4xf32> -> vector<64x36xf32>
    %c0_3 = arith.constant 0 : index
    %c0_4 = arith.constant 0 : index
    %21 = vector.load %arg2[%c0_3, %c0_4] : memref<36x16xf32, #tpu.memory_space<vmem>>, vector<36x16xf32>
    %cst = arith.constant dense<0.000000e+00> : vector<64x16xf32>
    %22 = tpu.matmul %20, %21, %cst {dimension_numbers = #tpu.dot_dimension_numbers<[1], [0], [0], [1], [0, 0, 1, 1], [], []>} : vector<64x36xf32>, vector<36x16xf32>, vector<64x16xf32> -> vector<64x16xf32>
    %23 = vector.extract_strided_slice %22 {offsets = [0, 0], sizes = [64, 8], strides = [1, 1]} : vector<64x16xf32> to vector<64x8xf32>
    %24 = vector.extract_strided_slice %22 {offsets = [0, 8], sizes = [64, 8], strides = [1, 1]} : vector<64x16xf32> to vector<64x8xf32>
    %c0_5 = arith.constant 0 : index
    %c0_6 = arith.constant 0 : index
    %25 = vector.load %arg3[%c0_5, %c0_6] : memref<1x8xf32, #tpu.memory_space<vmem>>, vector<1x8xf32>
    %26 = vector.broadcast %25 : vector<1x8xf32> to vector<64x8xf32>
    %27 = arith.addf %24, %26 : vector<64x8xf32>
    %cst_7 = arith.constant 0.000000e+00 : f32
    %28 = vector.broadcast %cst_7 : f32 to vector<64x8xf32>
    %29 = arith.cmpf oge, %27, %28 : vector<64x8xf32>
    %c0_8 = arith.constant 0 : index
    %c0_9 = arith.constant 0 : index
    %30 = vector.load %arg4[%c0_8, %c0_9] : memref<1x8xf32, #tpu.memory_space<vmem>>, vector<1x8xf32>
    %31 = vector.broadcast %30 : vector<1x8xf32> to vector<64x8xf32>
    %32 = arith.mulf %31, %27 : vector<64x8xf32>
    %33 = arith.select %29, %27, %32 : vector<64x8xi1>, vector<64x8xf32>
    %cst_10 = arith.constant 0.000000e+00 : f32
    %34 = vector.broadcast %cst_10 : f32 to vector<10x8xf32>
    %c0_11 = arith.constant 0 : index
    %c0_12 = arith.constant 0 : index
    %c0_13 = arith.constant 0 : index
    %35 = vector.load %arg12[%c0_11, %c0_12, %c0_13] : memref<10x10x8xf32, #tpu.memory_space<vmem>>, vector<1x10x8xf32>
    %36 = vector.shape_cast %35 : vector<1x10x8xf32> to vector<10x8xf32>
    %37 = vector.shape_cast %34 : vector<10x8xf32> to vector<1x10x8xf32>
    tpu.vector_store %arg12[%c0_11, %c0_12, %c0_13], %37 {strides = array<i32>} : memref<10x10x8xf32, #tpu.memory_space<vmem>>, vector<1x10x8xf32>,
    %cst_14 = arith.constant 0.000000e+00 : f32
    %38 = vector.broadcast %cst_14 : f32 to vector<10x8xf32>
    %c9 = arith.constant 9 : index
    %c0_15 = arith.constant 0 : index
    %c0_16 = arith.constant 0 : index
    %39 = vector.load %arg12[%c9, %c0_15, %c0_16] : memref<10x10x8xf32, #tpu.memory_space<vmem>>, vector<1x10x8xf32>
    %40 = vector.shape_cast %39 : vector<1x10x8xf32> to vector<10x8xf32>
    %41 = vector.shape_cast %38 : vector<10x8xf32> to vector<1x10x8xf32>
    tpu.vector_store %arg12[%c9, %c0_15, %c0_16], %41 {strides = array<i32>} : memref<10x10x8xf32, #tpu.memory_space<vmem>>, vector<1x10x8xf32>,
    %cst_17 = arith.constant 0.000000e+00 : f32
    %42 = vector.broadcast %cst_17 : f32 to vector<10x8xf32>
    %c0_18 = arith.constant 0 : index
    %c0_19 = arith.constant 0 : index
    %c0_20 = arith.constant 0 : index
    %43 = vector.load %arg12[%c0_18, %c0_19, %c0_20] : memref<10x10x8xf32, #tpu.memory_space<vmem>>, vector<10x1x8xf32>
    %44 = vector.shape_cast %43 : vector<10x1x8xf32> to vector<10x8xf32>
    %45 = vector.shape_cast %42 : vector<10x8xf32> to vector<10x1x8xf32>
    tpu.vector_store %arg12[%c0_18, %c0_19, %c0_20], %45 {strides = array<i32>} : memref<10x10x8xf32, #tpu.memory_space<vmem>>, vector<10x1x8xf32>,
    %cst_21 = arith.constant 0.000000e+00 : f32
    %46 = vector.broadcast %cst_21 : f32 to vector<10x8xf32>
    %c0_22 = arith.constant 0 : index
    %c9_23 = arith.constant 9 : index
    %c0_24 = arith.constant 0 : index
    %47 = vector.load %arg12[%c0_22, %c9_23, %c0_24] : memref<10x10x8xf32, #tpu.memory_space<vmem>>, vector<10x1x8xf32>
    %48 = vector.shape_cast %47 : vector<10x1x8xf32> to vector<10x8xf32>
    %49 = vector.shape_cast %46 : vector<10x8xf32> to vector<10x1x8xf32>
    tpu.vector_store %arg12[%c0_22, %c9_23, %c0_24], %49 {strides = array<i32>} : memref<10x10x8xf32, #tpu.memory_space<vmem>>, vector<10x1x8xf32>,
    %50 = vector.shape_cast %33 : vector<64x8xf32> to vector<8x8x8xf32>
    %c1 = arith.constant 1 : index
    %c1_25 = arith.constant 1 : index
    %c0_26 = arith.constant 0 : index
    %51 = vector.load %arg12[%c1, %c1_25, %c0_26] : memref<10x10x8xf32, #tpu.memory_space<vmem>>, vector<8x8x8xf32>
    tpu.vector_store %arg12[%c1, %c1_25, %c0_26], %50 {strides = array<i32>} : memref<10x10x8xf32, #tpu.memory_space<vmem>>, vector<8x8x8xf32>,
    %c0_27 = arith.constant 0 : index
    %c0_28 = arith.constant 0 : index
    %c0_29 = arith.constant 0 : index
    %52 = vector.load %arg12[%c0_27, %c0_28, %c0_29] : memref<10x10x8xf32, #tpu.memory_space<vmem>>, vector<8x8x8xf32>
    %53 = vector.shape_cast %52 : vector<8x8x8xf32> to vector<64x8xf32>
    %c0_30 = arith.constant 0 : index
    %c1_31 = arith.constant 1 : index
    %c0_32 = arith.constant 0 : index
    %54 = vector.load %arg12[%c0_30, %c1_31, %c0_32] : memref<10x10x8xf32, #tpu.memory_space<vmem>>, vector<8x8x8xf32>
    %55 = vector.shape_cast %54 : vector<8x8x8xf32> to vector<64x8xf32>
    %c0_33 = arith.constant 0 : index
    %c2 = arith.constant 2 : index
    %c0_34 = arith.constant 0 : index
    %56 = vector.load %arg12[%c0_33, %c2, %c0_34] : memref<10x10x8xf32, #tpu.memory_space<vmem>>, vector<8x8x8xf32>
    %57 = vector.shape_cast %56 : vector<8x8x8xf32> to vector<64x8xf32>
    %c1_35 = arith.constant 1 : index
    %c0_36 = arith.constant 0 : index
    %c0_37 = arith.constant 0 : index
    %58 = vector.load %arg12[%c1_35, %c0_36, %c0_37] : memref<10x10x8xf32, #tpu.memory_space<vmem>>, vector<8x8x8xf32>
    %59 = vector.shape_cast %58 : vector<8x8x8xf32> to vector<64x8xf32>
    %c1_38 = arith.constant 1 : index
    %c1_39 = arith.constant 1 : index
    %c0_40 = arith.constant 0 : index
    %60 = vector.load %arg12[%c1_38, %c1_39, %c0_40] : memref<10x10x8xf32, #tpu.memory_space<vmem>>, vector<8x8x8xf32>
    %61 = vector.shape_cast %60 : vector<8x8x8xf32> to vector<64x8xf32>
    %c1_41 = arith.constant 1 : index
    %c2_42 = arith.constant 2 : index
    %c0_43 = arith.constant 0 : index
    %62 = vector.load %arg12[%c1_41, %c2_42, %c0_43] : memref<10x10x8xf32, #tpu.memory_space<vmem>>, vector<8x8x8xf32>
    %63 = vector.shape_cast %62 : vector<8x8x8xf32> to vector<64x8xf32>
    %c2_44 = arith.constant 2 : index
    %c0_45 = arith.constant 0 : index
    %c0_46 = arith.constant 0 : index
    %64 = vector.load %arg12[%c2_44, %c0_45, %c0_46] : memref<10x10x8xf32, #tpu.memory_space<vmem>>, vector<8x8x8xf32>
    %65 = vector.shape_cast %64 : vector<8x8x8xf32> to vector<64x8xf32>
    %c2_47 = arith.constant 2 : index
    %c1_48 = arith.constant 1 : index
    %c0_49 = arith.constant 0 : index
    %66 = vector.load %arg12[%c2_47, %c1_48, %c0_49] : memref<10x10x8xf32, #tpu.memory_space<vmem>>, vector<8x8x8xf32>
    %67 = vector.shape_cast %66 : vector<8x8x8xf32> to vector<64x8xf32>
    %c2_50 = arith.constant 2 : index
    %c2_51 = arith.constant 2 : index
    %c0_52 = arith.constant 0 : index
    %68 = vector.load %arg12[%c2_50, %c2_51, %c0_52] : memref<10x10x8xf32, #tpu.memory_space<vmem>>, vector<8x8x8xf32>
    %69 = vector.shape_cast %68 : vector<8x8x8xf32> to vector<64x8xf32>
    %70 = tpu.concatenate %53, %55, %57, %59, %61, %63, %65, %67, %69 in 1 : vector<64x8xf32>, vector<64x8xf32>, vector<64x8xf32>, vector<64x8xf32>, vector<64x8xf32>, vector<64x8xf32>, vector<64x8xf32>, vector<64x8xf32>, vector<64x8xf32> -> vector<64x72xf32>
    %c0_53 = arith.constant 0 : index
    %c0_54 = arith.constant 0 : index
    %71 = vector.load %arg5[%c0_53, %c0_54] : memref<72x8xf32, #tpu.memory_space<vmem>>, vector<72x8xf32>
    %cst_55 = arith.constant dense<0.000000e+00> : vector<64x8xf32>
    %72 = tpu.matmul %70, %71, %cst_55 {dimension_numbers = #tpu.dot_dimension_numbers<[1], [0], [0], [1], [0, 0, 1, 1], [], []>} : vector<64x72xf32>, vector<72x8xf32>, vector<64x8xf32> -> vector<64x8xf32>
    %c0_56 = arith.constant 0 : index
    %c0_57 = arith.constant 0 : index
    %73 = vector.load %arg6[%c0_56, %c0_57] : memref<1x8xf32, #tpu.memory_space<vmem>>, vector<1x8xf32>
    %74 = vector.broadcast %73 : vector<1x8xf32> to vector<64x8xf32>
    %75 = arith.addf %72, %74 : vector<64x8xf32>
    %cst_58 = arith.constant dense<0.000000e+00> : vector<8xf32>
    %76 = vector.multi_reduction <add>, %75, %cst_58 [0] : vector<64x8xf32> to vector<8xf32>
    %77 = vector.shape_cast %76 : vector<8xf32> to vector<1x8xf32>
    %cst_59 = arith.constant 1.562500e-02 : f32
    %78 = vector.broadcast %cst_59 : f32 to vector<1x8xf32>
    %79 = arith.mulf %77, %78 : vector<1x8xf32>
    %80 = vector.shape_cast %79 : vector<1x8xf32> to vector<1x8xf32>
    %81 = vector.broadcast %80 : vector<1x8xf32> to vector<8x8xf32>
    %c0_60 = arith.constant 0 : index
    %c0_61 = arith.constant 0 : index
    %82 = vector.load %arg7[%c0_60, %c0_61] : memref<8x16xf32, #tpu.memory_space<vmem>>, vector<8x16xf32>
    %cst_62 = arith.constant dense<0.000000e+00> : vector<8x16xf32>
    %83 = tpu.matmul %81, %82, %cst_62 {dimension_numbers = #tpu.dot_dimension_numbers<[1], [0], [0], [1], [0, 0, 1, 1], [], []>} : vector<8x8xf32>, vector<8x16xf32>, vector<8x16xf32> -> vector<8x16xf32>
    %cst_63 = arith.constant 0.000000e+00 : f32
    %84 = vector.broadcast %cst_63 : f32 to vector<8x16xf32>
    %85 = arith.cmpf oge, %83, %84 : vector<8x16xf32>
    %c0_64 = arith.constant 0 : index
    %c0_65 = arith.constant 0 : index
    %86 = vector.load %arg8[%c0_64, %c0_65] : memref<1x1xf32, #tpu.memory_space<vmem>>, vector<1x1xf32>
    %87 = vector.broadcast %86 : vector<1x1xf32> to vector<8x16xf32>
    %88 = arith.mulf %87, %83 : vector<8x16xf32>
    %89 = arith.select %85, %83, %88 : vector<8x16xi1>, vector<8x16xf32>
    %c0_66 = arith.constant 0 : index
    %c0_67 = arith.constant 0 : index
    %90 = vector.load %arg9[%c0_66, %c0_67] : memref<16x8xf32, #tpu.memory_space<vmem>>, vector<16x8xf32>
    %cst_68 = arith.constant dense<0.000000e+00> : vector<8x8xf32>
    %91 = tpu.matmul %89, %90, %cst_68 {dimension_numbers = #tpu.dot_dimension_numbers<[1], [0], [0], [1], [0, 0, 1, 1], [], []>} : vector<8x16xf32>, vector<16x8xf32>, vector<8x8xf32> -> vector<8x8xf32>
    %92 = vector.extract_strided_slice %91 {offsets = [0, 0], sizes = [1, 8], strides = [1, 1]} : vector<8x8xf32> to vector<1x8xf32>
    %93 = arith.negf %92 : vector<1x8xf32>
    %94 = math.exp %93 : vector<1x8xf32>
    %cst_69 = arith.constant 1.000000e+00 : f32
    %95 = vector.broadcast %cst_69 : f32 to vector<1x8xf32>
    %96 = arith.addf %95, %94 : vector<1x8xf32>
    %97 = arith.divf %95, %96 : vector<1x8xf32>
    %98 = vector.broadcast %97 : vector<1x8xf32> to vector<64x8xf32>
    %99 = arith.mulf %75, %98 : vector<64x8xf32>
    %100 = arith.addf %99, %23 : vector<64x8xf32>
    %cst_70 = arith.constant 0.000000e+00 : f32
    %101 = vector.broadcast %cst_70 : f32 to vector<64x8xf32>
    %102 = arith.cmpf oge, %100, %101 : vector<64x8xf32>
    %c0_71 = arith.constant 0 : index
    %c0_72 = arith.constant 0 : index
    %103 = vector.load %arg10[%c0_71, %c0_72] : memref<1x8xf32, #tpu.memory_space<vmem>>, vector<1x8xf32>
    %104 = vector.broadcast %103 : vector<1x8xf32> to vector<64x8xf32>
    %105 = arith.mulf %104, %100 : vector<64x8xf32>
    %106 = arith.select %102, %100, %105 : vector<64x8xi1>, vector<64x8xf32>
    %c0_73 = arith.constant 0 : index
    %c0_74 = arith.constant 0 : index
    %c0_75 = arith.constant 0 : index
    %107 = vector.load %arg11[%c0_73, %c0_74, %c0_75] : memref<1x64x8xf32, #tpu.memory_space<vmem>>, vector<1x64x8xf32>
    %108 = vector.shape_cast %107 : vector<1x64x8xf32> to vector<64x8xf32>
    %109 = vector.shape_cast %106 : vector<64x8xf32> to vector<1x64x8xf32>
    tpu.vector_store %arg11[%c0_73, %c0_74, %c0_75], %109 {strides = array<i32>} : memref<1x64x8xf32, #tpu.memory_space<vmem>>, vector<1x64x8xf32>,
    return
  }
  func.func @transform_0(%arg0: i32) -> (i32, i32, i32, i32) {
    %c0_i32 = arith.constant 0 : i32
    %c0_i32_0 = arith.constant 0 : i32
    %c0_i32_1 = arith.constant 0 : i32
    %c0_i32_2 = arith.constant 0 : i32
    return %arg0, %c0_i32, %c0_i32_0, %c0_i32_1 : i32, i32, i32, i32
  }
  func.func @transform_1(%arg0: i32) -> (i32, i32) {
    %c0_i32 = arith.constant 0 : i32
    %c0_i32_0 = arith.constant 0 : i32
    %c0_i32_1 = arith.constant 0 : i32
    return %c0_i32, %c0_i32_0 : i32, i32
  }
  func.func @transform_2(%arg0: i32) -> (i32, i32) {
    %c0_i32 = arith.constant 0 : i32
    %c0_i32_0 = arith.constant 0 : i32
    %c0_i32_1 = arith.constant 0 : i32
    return %c0_i32, %c0_i32_0 : i32, i32
  }
  func.func @transform_3(%arg0: i32) -> (i32, i32) {
    %c0_i32 = arith.constant 0 : i32
    %c0_i32_0 = arith.constant 0 : i32
    %c0_i32_1 = arith.constant 0 : i32
    return %c0_i32, %c0_i32_0 : i32, i32
  }
  func.func @transform_4(%arg0: i32) -> (i32, i32) {
    %c0_i32 = arith.constant 0 : i32
    %c0_i32_0 = arith.constant 0 : i32
    %c0_i32_1 = arith.constant 0 : i32
    return %c0_i32, %c0_i32_0 : i32, i32
  }
  func.func @transform_5(%arg0: i32) -> (i32, i32) {
    %c0_i32 = arith.constant 0 : i32
    %c0_i32_0 = arith.constant 0 : i32
    %c0_i32_1 = arith.constant 0 : i32
    return %c0_i32, %c0_i32_0 : i32, i32
  }
  func.func @transform_6(%arg0: i32) -> (i32, i32) {
    %c0_i32 = arith.constant 0 : i32
    %c0_i32_0 = arith.constant 0 : i32
    %c0_i32_1 = arith.constant 0 : i32
    return %c0_i32, %c0_i32_0 : i32, i32
  }
  func.func @transform_7(%arg0: i32) -> (i32, i32) {
    %c0_i32 = arith.constant 0 : i32
    %c0_i32_0 = arith.constant 0 : i32
    %c0_i32_1 = arith.constant 0 : i32
    return %c0_i32, %c0_i32_0 : i32, i32
  }
  func.func @transform_8(%arg0: i32) -> (i32, i32) {
    %c0_i32 = arith.constant 0 : i32
    %c0_i32_0 = arith.constant 0 : i32
    %c0_i32_1 = arith.constant 0 : i32
    return %c0_i32, %c0_i32_0 : i32, i32
  }
  func.func @transform_9(%arg0: i32) -> (i32, i32) {
    %c0_i32 = arith.constant 0 : i32
    %c0_i32_0 = arith.constant 0 : i32
    %c0_i32_1 = arith.constant 0 : i32
    return %c0_i32, %c0_i32_0 : i32, i32
  }
  func.func @transform_10(%arg0: i32) -> (i32, i32, i32) {
    %c0_i32 = arith.constant 0 : i32
    %c0_i32_0 = arith.constant 0 : i32
    %c0_i32_1 = arith.constant 0 : i32
    return %arg0, %c0_i32, %c0_i32_0 : i32, i32, i32
  }
}

</mosaic_0001>

<llo_original>
// kernel: tpu_custom_call.1
$region0: #{tpu_custom_call.1}
  #allocation0 [shape = 'u32[]', space=smem, size = 0x4, offset = 0x4, fixed_abs, tag = 'smem constant byte address 0x4 - core index']
  #allocation1 [shape = 'u32[72,128]{1,0:T(1,128)}', space=vmem, size = 0x9000, scoped, tag = 'internal scratch']
  #allocation2 [shape = 'f32[10,10,8]{2,1,0:T(8,128)}', space=vmem, size = 0x14000, scoped, tag = 'scratch operand']
  #allocation3 [shape = 'f32[1,1]{1,0:T(1,128)S(1)}', space=vmem, size = 0x200, scoped, tag = 'scoped memory for tpu_custom_call.1']
  %s0 = inlined_call_operand.vmem [shape: f32[2,9,9,16], index: 0, kind: input, shape index: {}]
  %s1 = inlined_call_operand.vmem [shape: f32[36,16], index: 1, kind: input, shape index: {}]
  %s2 = inlined_call_operand.vmem [shape: f32[1,8], index: 2, kind: input, shape index: {}]
  %s3 = inlined_call_operand.vmem [shape: f32[1,8], index: 3, kind: input, shape index: {}]
  %s4 = inlined_call_operand.vmem [shape: f32[72,8], index: 4, kind: input, shape index: {}]
  %s5 = inlined_call_operand.vmem [shape: f32[1,8], index: 5, kind: input, shape index: {}]
  %s6 = inlined_call_operand.vmem [shape: f32[8,16], index: 6, kind: input, shape index: {}]
  %s7 = inlined_call_operand.<no memory space> [shape: f32[1,1], index: 7, kind: input, shape index: {}]
  %s8 = inlined_call_operand.vmem [shape: f32[16,8], index: 8, kind: input, shape index: {}]
  %s9 = inlined_call_operand.vmem [shape: f32[1,8], index: 9, kind: input, shape index: {}]
  %s10 = inlined_call_operand.vmem [shape: f32[2,64,8], index: 10, kind: output, shape index: {}]
  %s11 = sld [smem:[#allocation0]]
  $region73: #{tpu_custom_call.1} parent=0
    _
  %s13 = ssub.s32 1, %s11
  %s14 = scalar_select 0, %s13, %s11
  %v15 = vstv %s7
  %16 = vst [vmem:[#allocation3] sm:$0x1] %v15
  loop: start=0, step=1, limit=4
  $region2: #{tpu_custom_call.1} parent=0 // loop_pre_header
    _
  $region3: #{tpu_custom_call.1} parent=0 // loop_header
    %s18 = sphi 0, %s22
    %p19 = scmp.ge.s32.totalorder %s18, 4
    %s28 = sphi 0, %s30
    %s31 = sphi 0, %s28
    %s32 = sphi 0, %s31
    %s48 = sphi 0, %s32
    %s52 = sphi 0, %s52
    %s54 = sphi 0, %s52
    %s55 = sphi 0, %s54
    %s69 = sphi 0, %s55
    %s73 = sphi 0, %s73
    %s75 = sphi 0, %s73
    %s76 = sphi 0, %s75
    %s90 = sphi 0, %s76
    %s94 = sphi 0, %s94
    %s96 = sphi 0, %s94
    %s97 = sphi 0, %s96
    %s111 = sphi 0, %s97
    %s115 = sphi 0, %s115
    %s117 = sphi 0, %s115
    %s118 = sphi 0, %s117
    %s132 = sphi 0, %s118
    %s136 = sphi 0, %s136
    %s138 = sphi 0, %s136
    %s139 = sphi 0, %s138
    %s153 = sphi 0, %s139
    %s157 = sphi 0, %s157
    %s159 = sphi 0, %s157
    %s160 = sphi 0, %s159
    %s174 = sphi 0, %s160
    %s178 = sphi 0, %s178
    %s180 = sphi 0, %s178
    %s181 = sphi 0, %s180
    %s195 = sphi 0, %s181
    %s199 = sphi 0, %s199
    %s201 = sphi 0, %s199
    %s202 = sphi 0, %s201
    %s216 = sphi 0, %s202
    %s220 = sphi 0, %s220
    %s222 = sphi 0, %s220
    %s223 = sphi 0, %s222
    %s237 = sphi 0, %s223
    %s243 = sphi 0, %s245
    %s246 = sphi 0, %s243
    %s247 = sphi 0, %s246
    %s263 = sphi 0, %s247
  $region4: #{tpu_custom_call.1} parent=0 // loop_header_branch
    %21 = sbr.rel (%p19) target = $region8
  $region5: #{tpu_custom_call.1} parent=0 // loop_body
    %s23 = ssub.s32 %s18, 1
    %s24 = ssub.s32 %s18, 2
    %s25 = sadd.s32 %s18, 1
    %s26 = ssub.s32 %s18, %s25
    %p27 = scmp.eq.s32.totalorder %s26, 0
    %s29 = sadd.s32 %s28, 1
    %s30 = scalar_select %p27, %s28, %s29
    %p33 = pneg %p27
    %p34 = scmp.eq.s32.totalorder %s18, 1
    %p35 = por %p33, %p34
    %p36 = scmp.ne.s32.totalorder %s28, %s31
    %p37 = scmp.eq.s32.totalorder %s18, 0
    %p38 = por %p36, %p37
    %p39 = scmp.ne.s32.totalorder %s28, %s31
    %p40 = scmp.eq.s32.totalorder %s23, 1
    %p41 = por %p39, %p40
    %p42 = scmp.ne.s32.totalorder %s31, %s32
    %p43 = scmp.eq.s32.totalorder %s23, 0
    %p44 = por %p42, %p43
    %p45 = scmp.ne.s32.totalorder %s31, %s32
    %p46 = scmp.eq.s32.totalorder %s24, 1
    %p47 = por %p45, %p46
    %p49 = scmp.ne.s32.totalorder %s32, %s48
    %p50 = scmp.eq.s32.totalorder %s24, 0
    %p51 = por %p49, %p50
    %s53 = sadd.s32 %s52, 1
    %p56 = scmp.eq.s32.totalorder %s18, 1
    %p57 = scmp.ne.s32.totalorder %s52, %s54
    %p58 = scmp.eq.s32.totalorder %s18, 0
    %p59 = por %p57, %p58
    %p60 = scmp.ne.s32.totalorder %s52, %s54
    %p61 = scmp.eq.s32.totalorder %s23, 1
    %p62 = por %p60, %p61
    %p63 = scmp.ne.s32.totalorder %s54, %s55
    %p64 = scmp.eq.s32.totalorder %s23, 0
    %p65 = por %p63, %p64
    %p66 = scmp.ne.s32.totalorder %s54, %s55
    %p67 = scmp.eq.s32.totalorder %s24, 1
    %p68 = por %p66, %p67
    %p70 = scmp.ne.s32.totalorder %s55, %s69
    %p71 = scmp.eq.s32.totalorder %s24, 0
    %p72 = por %p70, %p71
    %s74 = sadd.s32 %s73, 1
    %p77 = scmp.eq.s32.totalorder %s18, 1
    %p78 = scmp.ne.s32.totalorder %s73, %s75
    %p79 = scmp.eq.s32.totalorder %s18, 0
    %p80 = por %p78, %p79
    %p81 = scmp.ne.s32.totalorder %s73, %s75
    %p82 = scmp.eq.s32.totalorder %s23, 1
    %p83 = por %p81, %p82
    %p84 = scmp.ne.s32.totalorder %s75, %s76
    %p85 = scmp.eq.s32.totalorder %s23, 0
    %p86 = por %p84, %p85
    %p87 = scmp.ne.s32.totalorder %s75, %s76
    %p88 = scmp.eq.s32.totalorder %s24, 1
    %p89 = por %p87, %p88
    %p91 = scmp.ne.s32.totalorder %s76, %s90
    %p92 = scmp.eq.s32.totalorder %s24, 0
    %p93 = por %p91, %p92
    %s95 = sadd.s32 %s94, 1
    %p98 = scmp.eq.s32.totalorder %s18, 1
    %p99 = scmp.ne.s32.totalorder %s94, %s96
    %p100 = scmp.eq.s32.totalorder %s18, 0
    %p101 = por %p99, %p100
    %p102 = scmp.ne.s32.totalorder %s94, %s96
    %p103 = scmp.eq.s32.totalorder %s23, 1
    %p104 = por %p102, %p103
    %p105 = scmp.ne.s32.totalorder %s96, %s97
    %p106 = scmp.eq.s32.totalorder %s23, 0
    %p107 = por %p105, %p106
    %p108 = scmp.ne.s32.totalorder %s96, %s97
    %p109 = scmp.eq.s32.totalorder %s24, 1
    %p110 = por %p108, %p109
    %p112 = scmp.ne.s32.totalorder %s97, %s111
    %p113 = scmp.eq.s32.totalorder %s24, 0
    %p114 = por %p112, %p113
    %s116 = sadd.s32 %s115, 1
    %p119 = scmp.eq.s32.totalorder %s18, 1
    %p120 = scmp.ne.s32.totalorder %s115, %s117
    %p121 = scmp.eq.s32.totalorder %s18, 0
    %p122 = por %p120, %p121
    %p123 = scmp.ne.s32.totalorder %s115, %s117
    %p124 = scmp.eq.s32.totalorder %s23, 1
    %p125 = por %p123, %p124
    %p126 = scmp.ne.s32.totalorder %s117, %s118
    %p127 = scmp.eq.s32.totalorder %s23, 0
    %p128 = por %p126, %p127
    %p129 = scmp.ne.s32.totalorder %s117, %s118
    %p130 = scmp.eq.s32.totalorder %s24, 1
    %p131 = por %p129, %p130
    %p133 = scmp.ne.s32.totalorder %s118, %s132
    %p134 = scmp.eq.s32.totalorder %s24, 0
    %p135 = por %p133, %p134
    %s137 = sadd.s32 %s136, 1
    %p140 = scmp.eq.s32.totalorder %s18, 1
    %p141 = scmp.ne.s32.totalorder %s136, %s138
    %p142 = scmp.eq.s32.totalorder %s18, 0
    %p143 = por %p141, %p142
    %p144 = scmp.ne.s32.totalorder %s136, %s138
    %p145 = scmp.eq.s32.totalorder %s23, 1
    %p146 = por %p144, %p145
    %p147 = scmp.ne.s32.totalorder %s138, %s139
    %p148 = scmp.eq.s32.totalorder %s23, 0
    %p149 = por %p147, %p148
    %p150 = scmp.ne.s32.totalorder %s138, %s139
    %p151 = scmp.eq.s32.totalorder %s24, 1
    %p152 = por %p150, %p151
    %p154 = scmp.ne.s32.totalorder %s139, %s153
    %p155 = scmp.eq.s32.totalorder %s24, 0
    %p156 = por %p154, %p155
    %s158 = sadd.s32 %s157, 1
    %p161 = scmp.eq.s32.totalorder %s18, 1
    %p162 = scmp.ne.s32.totalorder %s157, %s159
    %p163 = scmp.eq.s32.totalorder %s18, 0
    %p164 = por %p162, %p163
    %p165 = scmp.ne.s32.totalorder %s157, %s159
    %p166 = scmp.eq.s32.totalorder %s23, 1
    %p167 = por %p165, %p166
    %p168 = scmp.ne.s32.totalorder %s159, %s160
    %p169 = scmp.eq.s32.totalorder %s23, 0
    %p170 = por %p168, %p169
    %p171 = scmp.ne.s32.totalorder %s159, %s160
    %p172 = scmp.eq.s32.totalorder %s24, 1
    %p173 = por %p171, %p172
    %p175 = scmp.ne.s32.totalorder %s160, %s174
    %p176 = scmp.eq.s32.totalorder %s24, 0
    %p177 = por %p175, %p176
    %s179 = sadd.s32 %s178, 1
    %p182 = scmp.eq.s32.totalorder %s18, 1
    %p183 = scmp.ne.s32.totalorder %s178, %s180
    %p184 = scmp.eq.s32.totalorder %s18, 0
    %p185 = por %p183, %p184
    %p186 = scmp.ne.s32.totalorder %s178, %s180
    %p187 = scmp.eq.s32.totalorder %s23, 1
    %p188 = por %p186, %p187
    %p189 = scmp.ne.s32.totalorder %s180, %s181
    %p190 = scmp.eq.s32.totalorder %s23, 0
    %p191 = por %p189, %p190
    %p192 = scmp.ne.s32.totalorder %s180, %s181
    %p193 = scmp.eq.s32.totalorder %s24, 1
    %p194 = por %p192, %p193
    %p196 = scmp.ne.s32.totalorder %s181, %s195
    %p197 = scmp.eq.s32.totalorder %s24, 0
    %p198 = por %p196, %p197
    %s200 = sadd.s32 %s199, 1
    %p203 = scmp.eq.s32.totalorder %s18, 1
    %p204 = scmp.ne.s32.totalorder %s199, %s201
    %p205 = scmp.eq.s32.totalorder %s18, 0
    %p206 = por %p204, %p205
    %p207 = scmp.ne.s32.totalorder %s199, %s201
    %p208 = scmp.eq.s32.totalorder %s23, 1
    %p209 = por %p207, %p208
    %p210 = scmp.ne.s32.totalorder %s201, %s202
    %p211 = scmp.eq.s32.totalorder %s23, 0
    %p212 = por %p210, %p211
    %p213 = scmp.ne.s32.totalorder %s201, %s202
    %p214 = scmp.eq.s32.totalorder %s24, 1
    %p215 = por %p213, %p214
    %p217 = scmp.ne.s32.totalorder %s202, %s216
    %p218 = scmp.eq.s32.totalorder %s24, 0
    %p219 = por %p217, %p218
    %s221 = sadd.s32 %s220, 1
    %p224 = scmp.eq.s32.totalorder %s18, 1
    %p225 = scmp.ne.s32.totalorder %s220, %s222
    %p226 = scmp.eq.s32.totalorder %s18, 0
    %p227 = por %p225, %p226
    %p228 = scmp.ne.s32.totalorder %s220, %s222
    %p229 = scmp.eq.s32.totalorder %s23, 1
    %p230 = por %p228, %p229
    %p231 = scmp.ne.s32.totalorder %s222, %s223
    %p232 = scmp.eq.s32.totalorder %s23, 0
    %p233 = por %p231, %p232
    %p234 = scmp.ne.s32.totalorder %s222, %s223
    %p235 = scmp.eq.s32.totalorder %s24, 1
    %p236 = por %p234, %p235
    %p238 = scmp.ne.s32.totalorder %s223, %s237
    %p239 = scmp.eq.s32.totalorder %s24, 0
    %p240 = por %p238, %p239
    %s241 = ssub.s32 %s18, %s25
    %p242 = scmp.eq.s32.totalorder %s241, 0
    %s244 = sadd.s32 %s243, 1
    %s245 = scalar_select %p242, %s243, %s244
    %p248 = pneg %p242
    %p249 = scmp.eq.s32.totalorder %s18, 1
    %p250 = por %p248, %p249
    %p251 = scmp.ne.s32.totalorder %s243, %s246
    %p252 = scmp.eq.s32.totalorder %s18, 0
    %p253 = por %p251, %p252
    %p254 = scmp.ne.s32.totalorder %s243, %s246
    %p255 = scmp.eq.s32.totalorder %s23, 1
    %p256 = por %p254, %p255
    %p257 = scmp.ne.s32.totalorder %s246, %s247
    %p258 = scmp.eq.s32.totalorder %s23, 0
    %p259 = por %p257, %p258
    %p260 = scmp.ne.s32.totalorder %s246, %s247
    %p261 = scmp.eq.s32.totalorder %s24, 1
    %p262 = por %p260, %p261
    %p264 = scmp.ne.s32.totalorder %s247, %s263
    %p265 = scmp.eq.s32.totalorder %s24, 0
    %p266 = por %p264, %p265
    %p267 = scmp.le.s32.totalorder 1, %s18
    %p268 = scmp.lt.s32.totalorder %s18, 3
    %p269 = pnand %p267, %p268
    %p270 = pneg %p269
    // Predicated region
    $region9: #{tpu_custom_call.1} parent=5 // pred_check
      _
    $region10: #{tpu_custom_call.1} parent=5 // pred_check_branch
      %272 = sbr.rel (%p269) target = $region12
    $region11: #{tpu_custom_call.1} parent=5 // pred_region
      %s273 = ssub.s32 %s18, 1
      // Predicated region
      $region13: #{tpu_custom_call.1} parent=11 // pred_check
        %p274 = pneg %p65
      $region14: #{tpu_custom_call.1} parent=11 // pred_check_branch
        %276 = sbr.rel (%p274) target = $region16
      $region15: #{tpu_custom_call.1} parent=11 // pred_region
        _
      $region16: #{tpu_custom_call.1} parent=11 // pred_fallthru
        _
      // Predicated region
      $region17: #{tpu_custom_call.1} parent=11 // pred_check
        %p277 = pneg %p86
      $region18: #{tpu_custom_call.1} parent=11 // pred_check_branch
        %279 = sbr.rel (%p277) target = $region20
      $region19: #{tpu_custom_call.1} parent=11 // pred_region
        _
      $region20: #{tpu_custom_call.1} parent=11 // pred_fallthru
        _
      // Predicated region
      $region21: #{tpu_custom_call.1} parent=11 // pred_check
        %p280 = pneg %p107
      $region22: #{tpu_custom_call.1} parent=11 // pred_check_branch
        %282 = sbr.rel (%p280) target = $region24
      $region23: #{tpu_custom_call.1} parent=11 // pred_region
        _
      $region24: #{tpu_custom_call.1} parent=11 // pred_fallthru
        _
      // Predicated region
      $region25: #{tpu_custom_call.1} parent=11 // pred_check
        %p283 = pneg %p128
      $region26: #{tpu_custom_call.1} parent=11 // pred_check_branch
        %285 = sbr.rel (%p283) target = $region28
      $region27: #{tpu_custom_call.1} parent=11 // pred_region
        _
      $region28: #{tpu_custom_call.1} parent=11 // pred_fallthru
        _
      // Predicated region
      $region29: #{tpu_custom_call.1} parent=11 // pred_check
        %p286 = pneg %p149
      $region30: #{tpu_custom_call.1} parent=11 // pred_check_branch
        %288 = sbr.rel (%p286) target = $region32
      $region31: #{tpu_custom_call.1} parent=11 // pred_region
        _
      $region32: #{tpu_custom_call.1} parent=11 // pred_fallthru
        _
      // Predicated region
      $region33: #{tpu_custom_call.1} parent=11 // pred_check
        %p289 = pneg %p170
      $region34: #{tpu_custom_call.1} parent=11 // pred_check_branch
        %291 = sbr.rel (%p289) target = $region36
      $region35: #{tpu_custom_call.1} parent=11 // pred_region
        _
      $region36: #{tpu_custom_call.1} parent=11 // pred_fallthru
        _
      // Predicated region
      $region37: #{tpu_custom_call.1} parent=11 // pred_check
        %p292 = pneg %p191
      $region38: #{tpu_custom_call.1} parent=11 // pred_check_branch
        %294 = sbr.rel (%p292) target = $region40
      $region39: #{tpu_custom_call.1} parent=11 // pred_region
        _
      $region40: #{tpu_custom_call.1} parent=11 // pred_fallthru
        _
      // Predicated region
      $region41: #{tpu_custom_call.1} parent=11 // pred_check
        %p295 = pneg %p212
      $region42: #{tpu_custom_call.1} parent=11 // pred_check_branch
        %297 = sbr.rel (%p295) target = $region44
      $region43: #{tpu_custom_call.1} parent=11 // pred_region
        _
      $region44: #{tpu_custom_call.1} parent=11 // pred_fallthru
        _
      // Predicated region
      $region45: #{tpu_custom_call.1} parent=11 // pred_check
        %p298 = pneg %p233
      $region46: #{tpu_custom_call.1} parent=11 // pred_check_branch
        %300 = sbr.rel (%p298) target = $region48
      $region47: #{tpu_custom_call.1} parent=11 // pred_region
        _
      $region48: #{tpu_custom_call.1} parent=11 // pred_fallthru
        _
    $region12: #{tpu_custom_call.1} parent=5 // pred_fallthru
      _
    %p301 = scmp.lt.s32.totalorder %s18, 2
    // Predicated region
    $region49: #{tpu_custom_call.1} parent=5 // pred_check
      %p302 = pneg %p301
    $region50: #{tpu_custom_call.1} parent=5 // pred_check_branch
      %304 = sbr.rel (%p302) target = $region52
    $region51: #{tpu_custom_call.1} parent=5 // pred_region
      // Predicated region
      $region53: #{tpu_custom_call.1} parent=51 // pred_check
        %p305 = pneg %p38
      $region54: #{tpu_custom_call.1} parent=51 // pred_check_branch
        %307 = sbr.rel (%p305) target = $region56
      $region55: #{tpu_custom_call.1} parent=51 // pred_region
        %p308 = scmp.lt.s32.totalorder %s18, 1
        %s309 = scalar_select %p308, %s18, 1
        %s310 = smul.addr %s309, 18
        %s311 = smul.addr %s310, 8
        %s312 = scalar_lea.vmem %s0, %s311
      $region56: #{tpu_custom_call.1} parent=51 // pred_fallthru
        _
    $region52: #{tpu_custom_call.1} parent=5 // pred_fallthru
      _
    %p313 = scmp.le.s32.totalorder 1, %s18
    %p314 = scmp.lt.s32.totalorder %s18, 3
    %p315 = pnand %p313, %p314
    %p316 = pneg %p315
    // Predicated region
    $region57: #{tpu_custom_call.1} parent=5 // pred_check
      _
    $region58: #{tpu_custom_call.1} parent=5 // pred_check_branch
      %318 = sbr.rel (%p315) target = $region60
    $region59: #{tpu_custom_call.1} parent=5 // pred_region
      %s319 = ssub.s32 %s18, 1
      %p320 = scmp.lt.s32.totalorder %s23, 1
      %s321 = scalar_select %p320, %s23, 1
      %s322 = smul.addr %s321, 18
      %s323 = smul.addr %s322, 8
      %s324 = scalar_lea.vmem %s0, %s323
      %p325 = pneg %p44
      %p326 = pneg %p41
      %p327 = pneg %p65
      %p328 = pneg %p62
      %p329 = pneg %p86
      %p330 = pneg %p83
      %p331 = pneg %p107
      %p332 = pneg %p104
      %p333 = pneg %p128
      %p334 = pneg %p125
      %p335 = pneg %p149
      %p336 = pneg %p146
      %p337 = pneg %p170
      %p338 = pneg %p167
      %p339 = pneg %p191
      %p340 = pneg %p188
      %p341 = pneg %p212
      %p342 = pneg %p209
      %p343 = pneg %p233
      %p344 = pneg %p230
      %p345 = pneg %p259
      %p346 = pneg %p256
      %p347 = scmp.lt.s32.totalorder %s23, 1
      %s348 = scalar_select %p347, %s23, 1
      %s349 = smul.addr %s348, 8
      %s350 = smul.addr %s349, 8
      %s351 = scalar_lea.vmem %s10, %s350
      %p352 = scmp.lt.s32.totalorder %s23, 1
      %s353 = scalar_select %p352, %s23, 1
      %s354 = smul.addr %s353, 18
      %s355 = smul.addr %s354, 8
      %s356 = scalar_lea.vmem %s0, %s355
      %p357 = scmp.lt.s32.totalorder %s23, 1
      %s358 = scalar_select %p357, %s23, 1
      %s359 = smul.addr %s358, 8
      %s360 = smul.addr %s359, 8
      %s361 = scalar_lea.vmem %s10, %s360
      %v362 = vld [vmem:[%s356] sm:$0xff]
      %v363 = vld [vmem:[%s356 + $0x8] sm:$0x1]
      %v364 = vld [vmem:[%s356 + $0x10] sm:$0xff]
      %v365 = vld [vmem:[%s356 + $0x18] sm:$0x1]
      %v366 = vld [vmem:[%s356 + $0x20] sm:$0xff]
      %v367 = vld [vmem:[%s356 + $0x28] sm:$0x1]
      %v368 = vld [vmem:[%s356 + $0x30] sm:$0xff]
      %v369 = vld [vmem:[%s356 + $0x38] sm:$0x1]
      %v370 = vld [vmem:[%s356 + $0x40] sm:$0xff]
      %v371 = vld [vmem:[%s356 + $0x48] sm:$0x1]
      %v372 = vld [vmem:[%s356 + $0x50] sm:$0xff]
      %v373 = vld [vmem:[%s356 + $0x58] sm:$0x1]
      %v374 = vld [vmem:[%s356 + $0x60] sm:$0xff]
      %v375 = vld [vmem:[%s356 + $0x68] sm:$0x1]
      %v376 = vld [vmem:[%s356 + $0x70] sm:$0xff]
      %v377 = vld [vmem:[%s356 + $0x78] sm:$0x1]
      %v378 = vld [vmem:[%s356 + $0x80] sm:$0xff]
      %v379 = vld [vmem:[%s356 + $0x88] sm:$0x1]
      %vm396 = vcmask 1046528
      %v397 = vrot.slane %v362, 1
      %v398 = vrot.slane %v363, 1
      %v399 = vsel %vm396, %v397, %v398
      %v400 = vrot.slane %v364, 1
      %v401 = vrot.slane %v365, 1
      %v402 = vsel %vm396, %v400, %v401
      %v403 = vrot.slane %v366, 1
      %v404 = vrot.slane %v367, 1
      %v405 = vsel %vm396, %v403, %v404
      %v406 = vrot.slane %v368, 1
      %v407 = vrot.slane %v369, 1
      %v408 = vsel %vm396, %v406, %v407
      %v409 = vrot.slane %v370, 1
      %v410 = vrot.slane %v371, 1
      %v411 = vsel %vm396, %v409, %v410
      %v412 = vrot.slane %v372, 1
      %v413 = vrot.slane %v373, 1
      %v414 = vsel %vm396, %v412, %v413
      %v415 = vrot.slane %v374, 1
      %v416 = vrot.slane %v375, 1
      %v417 = vsel %vm396, %v415, %v416
      %v418 = vrot.slane %v376, 1
      %v419 = vrot.slane %v377, 1
      %v420 = vsel %vm396, %v418, %v419
      %v423 = vrot.slane %v378, 1
      %v424 = vrot.slane %v379, 1
      %v425 = vsel %vm396, %v423, %v424
      %426 = vrot.lane.b32.xlu0 %v399, 8
      %v427 = vpop.permute.xlu0 %426
      %428 = vrot.lane.b32.xlu0 %v402, 8
      %v429 = vpop.permute.xlu0 %428
      %430 = vrot.lane.b32.xlu0 %v405, 8
      %v431 = vpop.permute.xlu0 %430
      %432 = vrot.lane.b32.xlu0 %v408, 8
      %v433 = vpop.permute.xlu0 %432
      %434 = vrot.lane.b32.xlu0 %v411, 8
      %v435 = vpop.permute.xlu0 %434
      %436 = vrot.lane.b32.xlu0 %v414, 8
      %v437 = vpop.permute.xlu0 %436
      %438 = vrot.lane.b32.xlu0 %v417, 8
      %v439 = vpop.permute.xlu0 %438
      %440 = vrot.lane.b32.xlu0 %v420, 8
      %v441 = vpop.permute.xlu0 %440
      %450 = vrot.lane.b32.xlu0 %v362, 4
      %v451 = vpop.permute.xlu0 %450
      %452 = vrot.lane.b32.xlu0 %v364, 4
      %v453 = vpop.permute.xlu0 %452
      %454 = vrot.lane.b32.xlu0 %v366, 4
      %v455 = vpop.permute.xlu0 %454
      %456 = vrot.lane.b32.xlu0 %v368, 4
      %v457 = vpop.permute.xlu0 %456
      %458 = vrot.lane.b32.xlu0 %v370, 4
      %v459 = vpop.permute.xlu0 %458
      %460 = vrot.lane.b32.xlu0 %v372, 4
      %v461 = vpop.permute.xlu0 %460
      %462 = vrot.lane.b32.xlu0 %v374, 4
      %v463 = vpop.permute.xlu0 %462
      %464 = vrot.lane.b32.xlu0 %v376, 4
      %v465 = vpop.permute.xlu0 %464
      %474 = vrot.lane.b32.xlu0 %v399, 12
      %v475 = vpop.permute.xlu0 %474
      %476 = vrot.lane.b32.xlu0 %v402, 12
      %v477 = vpop.permute.xlu0 %476
      %478 = vrot.lane.b32.xlu0 %v405, 12
      %v479 = vpop.permute.xlu0 %478
      %480 = vrot.lane.b32.xlu0 %v408, 12
      %v481 = vpop.permute.xlu0 %480
      %482 = vrot.lane.b32.xlu0 %v411, 12
      %v483 = vpop.permute.xlu0 %482
      %484 = vrot.lane.b32.xlu0 %v414, 12
      %v485 = vpop.permute.xlu0 %484
      %486 = vrot.lane.b32.xlu0 %v417, 12
      %v487 = vpop.permute.xlu0 %486
      %488 = vrot.lane.b32.xlu0 %v420, 12
      %v489 = vpop.permute.xlu0 %488
      %498 = vrot.lane.b32.xlu0 %v364, 24
      %v499 = vpop.permute.xlu0 %498
      %500 = vrot.lane.b32.xlu0 %v366, 24
      %v501 = vpop.permute.xlu0 %500
      %502 = vrot.lane.b32.xlu0 %v368, 24
      %v503 = vpop.permute.xlu0 %502
      %504 = vrot.lane.b32.xlu0 %v370, 24
      %v505 = vpop.permute.xlu0 %504
      %506 = vrot.lane.b32.xlu0 %v372, 24
      %v507 = vpop.permute.xlu0 %506
      %508 = vrot.lane.b32.xlu0 %v374, 24
      %v509 = vpop.permute.xlu0 %508
      %510 = vrot.lane.b32.xlu0 %v376, 24
      %v511 = vpop.permute.xlu0 %510
      %512 = vrot.lane.b32.xlu0 %v378, 24
      %v513 = vpop.permute.xlu0 %512
      %522 = vrot.lane.b32.xlu0 %v402, 32
      %v523 = vpop.permute.xlu0 %522
      %524 = vrot.lane.b32.xlu0 %v405, 32
      %v525 = vpop.permute.xlu0 %524
      %526 = vrot.lane.b32.xlu0 %v408, 32
      %v527 = vpop.permute.xlu0 %526
      %528 = vrot.lane.b32.xlu0 %v411, 32
      %v529 = vpop.permute.xlu0 %528
      %530 = vrot.lane.b32.xlu0 %v414, 32
      %v531 = vpop.permute.xlu0 %530
      %532 = vrot.lane.b32.xlu0 %v417, 32
      %v533 = vpop.permute.xlu0 %532
      %534 = vrot.lane.b32.xlu0 %v420, 32
      %v535 = vpop.permute.xlu0 %534
      %536 = vrot.lane.b32.xlu0 %v425, 32
      %v537 = vpop.permute.xlu0 %536
      %vm546 = vcmask 64512
      %v547 = vsel %vm546, %v362, %v427
      %v548 = vsel %vm546, %v364, %v429
      %v549 = vsel %vm546, %v366, %v431
      %v550 = vsel %vm546, %v368, %v433
      %v551 = vsel %vm546, %v370, %v435
      %v552 = vsel %vm546, %v372, %v437
      %v553 = vsel %vm546, %v374, %v439
      %v554 = vsel %vm546, %v376, %v441
      %vm555 = vcmask 97280
      %v556 = vsel %vm555, %v547, %v451
      %v557 = vsel %vm555, %v548, %v453
      %v558 = vsel %vm555, %v549, %v455
      %v559 = vsel %vm555, %v550, %v457
      %v560 = vsel %vm555, %v551, %v459
      %v561 = vsel %vm555, %v552, %v461
      %v562 = vsel %vm555, %v553, %v463
      %v563 = vsel %vm555, %v554, %v465
      %vm564 = vcmask 130048
      %v565 = vsel %vm564, %v556, %v451
      %v566 = vsel %vm564, %v557, %v453
      %v567 = vsel %vm564, %v558, %v455
      %v568 = vsel %vm564, %v559, %v457
      %v569 = vsel %vm564, %v560, %v459
      %v570 = vsel %vm564, %v561, %v461
      %v571 = vsel %vm564, %v562, %v463
      %v572 = vsel %vm564, %v563, %v465
      %vm573 = vcmask 162816
      %v574 = vsel %vm573, %v565, %v475
      %v575 = vsel %vm573, %v566, %v477
      %v576 = vsel %vm573, %v567, %v479
      %v577 = vsel %vm573, %v568, %v481
      %v578 = vsel %vm573, %v569, %v483
      %v579 = vsel %vm573, %v570, %v485
      %v580 = vsel %vm573, %v571, %v487
      %v581 = vsel %vm573, %v572, %v489
      %vm582 = vcmask 195584
      %v583 = vsel %vm582, %v574, %v499
      %v584 = vsel %vm582, %v575, %v501
      %v585 = vsel %vm582, %v576, %v503
      %v586 = vsel %vm582, %v577, %v505
      %v587 = vsel %vm582, %v578, %v507
      %v588 = vsel %vm582, %v579, %v509
      %v589 = vsel %vm582, %v580, %v511
      %v590 = vsel %vm582, %v581, %v513
      %vm591 = vcmask 228352
      %v592 = vsel %vm591, %v583, %v499
      %v593 = vsel %vm591, %v584, %v501
      %v594 = vsel %vm591, %v585, %v503
      %v595 = vsel %vm591, %v586, %v505
      %v596 = vsel %vm591, %v587, %v507
      %v597 = vsel %vm591, %v588, %v509
      %v598 = vsel %vm591, %v589, %v511
      %v599 = vsel %vm591, %v590, %v513
      %vm600 = vcmask 261120
      %v601 = vsel %vm600, %v592, %v523
      %v602 = vsel %vm600, %v593, %v525
      %v603 = vsel %vm600, %v594, %v527
      %v604 = vsel %vm600, %v595, %v529
      %v605 = vsel %vm600, %v596, %v531
      %v606 = vsel %vm600, %v597, %v533
      %v607 = vsel %vm600, %v598, %v535
      %v608 = vsel %vm600, %v599, %v537
      %v609 = vld [vmem:[%s1] sm:$0xff]
      %v610 = vld [vmem:[%s1 + $0x8] sm:$0xff]
      %v611 = vld [vmem:[%s1 + $0x10] sm:$0xff]
      %v612 = vld [vmem:[%s1 + $0x18] sm:$0xff]
      %v613 = vld [vmem:[%s1 + $0x20] sm:$0xf]
      %vm614 = vcmask 293888
      %v616 = vsel %vm614, %v601, 0
      %v619 = vsel %vm614, %v602, 0
      %v622 = vsel %vm614, %v603, 0
      %v625 = vsel %vm614, %v604, 0
      %v628 = vsel %vm614, %v605, 0
      %v631 = vsel %vm614, %v606, 0
      %v634 = vsel %vm614, %v607, 0
      %v637 = vsel %vm614, %v608, 0
      %vm639 = vcmask 1043456
      %v641 = vsel %vm639, %v613, 0
      %643 = vmatpush.msra.mxu0 0.0
      %644 = vmatpush.msra.mxu0 0.0
      %645 = vmatpush.msra.mxu0 0.0
      %646 = vmatpush.msra.mxu0 0.0
      %647 = vmatpush.msra.mxu0 0.0
      %648 = vmatpush.msra.mxu0 0.0
      %649 = vmatpush.msra.mxu0 0.0
      %650 = vmatpush.msra.mxu0 0.0
      %651 = vmatpush.msra.mxu0 0.0
      %652 = vmatpush.msra.mxu0 0.0
      %653 = vmatpush.msra.mxu0 0.0
      %654 = vmatpush.msra.mxu0 %v641
      %655 = vmatpush.msra.mxu0 %v612
      %656 = vmatpush.msra.mxu0 %v611
      %657 = vmatpush.msra.mxu0 %v610
      %658 = vmatpush.msra.mxu0 %v609
      %659 = vmatmul.f32.gmra.mxu0 %v616
      %v660 = vpop.f32.mrf.mxu0
      %v661 = vadd.f32 0.0, %v660
      %662 = vmatmul.f32.gmra.mxu0 %v619
      %v663 = vpop.f32.mrf.mxu0
      %v664 = vadd.f32 0.0, %v663
      %665 = vmatmul.f32.gmra.mxu0 %v622
      %v666 = vpop.f32.mrf.mxu0
      %v667 = vadd.f32 0.0, %v666
      %668 = vmatmul.f32.gmra.mxu0 %v625
      %v669 = vpop.f32.mrf.mxu0
      %v670 = vadd.f32 0.0, %v669
      %671 = vmatmul.f32.gmra.mxu0 %v628
      %v672 = vpop.f32.mrf.mxu0
      %v673 = vadd.f32 0.0, %v672
      %674 = vmatmul.f32.gmra.mxu0 %v631
      %v675 = vpop.f32.mrf.mxu0
      %v676 = vadd.f32 0.0, %v675
      %677 = vmatmul.f32.gmra.mxu0 %v634
      %v678 = vpop.f32.mrf.mxu0
      %v679 = vadd.f32 0.0, %v678
      %680 = vmatmul.f32.gmra.mxu0 %v637
      %v681 = vpop.f32.mrf.mxu0
      %v682 = vadd.f32 0.0, %v681
      %683 = vdwg.mxu0
      %v684 = vld [vmem:[%s2] sm:$0x1]
      %v686 = vperm.slane %v684, 0
      %687 = vrot.lane.b32.xlu0 %v686, 8
      %v688 = vpop.permute.xlu0 %687
      %v690 = vadd.f32 %v661, %v688
      %v691 = vadd.f32 %v664, %v688
      %v692 = vadd.f32 %v667, %v688
      %v693 = vadd.f32 %v670, %v688
      %v694 = vadd.f32 %v673, %v688
      %v695 = vadd.f32 %v676, %v688
      %v696 = vadd.f32 %v679, %v688
      %v697 = vadd.f32 %v682, %v688
      %vm698 = vcmp.ge.f32.partialorder %v690, 0.0
      %vm699 = vcmp.ge.f32.partialorder %v691, 0.0
      %vm700 = vcmp.ge.f32.partialorder %v692, 0.0
      %vm701 = vcmp.ge.f32.partialorder %v693, 0.0
      %vm702 = vcmp.ge.f32.partialorder %v694, 0.0
      %vm703 = vcmp.ge.f32.partialorder %v695, 0.0
      %vm704 = vcmp.ge.f32.partialorder %v696, 0.0
      %vm705 = vcmp.ge.f32.partialorder %v697, 0.0
      %v706 = vld [vmem:[%s3] sm:$0x1]
      %v708 = vperm.slane %v706, 0
      %718 = vrot.lane.b32.xlu0 %v690, 120
      %v719 = vpop.permute.xlu0 %718
      %720 = vrot.lane.b32.xlu0 %v691, 120
      %v721 = vpop.permute.xlu0 %720
      %722 = vrot.lane.b32.xlu0 %v692, 120
      %v723 = vpop.permute.xlu0 %722
      %724 = vrot.lane.b32.xlu0 %v693, 120
      %v725 = vpop.permute.xlu0 %724
      %726 = vrot.lane.b32.xlu0 %v694, 120
      %v727 = vpop.permute.xlu0 %726
      %728 = vrot.lane.b32.xlu0 %v695, 120
      %v729 = vpop.permute.xlu0 %728
      %730 = vrot.lane.b32.xlu0 %v696, 120
      %v731 = vpop.permute.xlu0 %730
      %732 = vrot.lane.b32.xlu0 %v697, 120
      %v733 = vpop.permute.xlu0 %732
      %v742 = vmul.f32 %v708, %v719
      %v743 = vmul.f32 %v708, %v721
      %v744 = vmul.f32 %v708, %v723
      %v745 = vmul.f32 %v708, %v725
      %v746 = vmul.f32 %v708, %v727
      %v747 = vmul.f32 %v708, %v729
      %v748 = vmul.f32 %v708, %v731
      %v749 = vmul.f32 %v708, %v733
      %758 = vrot.lane.b32.xlu0 %v742, 8
      %v759 = vpop.permute.xlu0 %758
      %760 = vrot.lane.b32.xlu0 %v743, 8
      %v761 = vpop.permute.xlu0 %760
      %762 = vrot.lane.b32.xlu0 %v744, 8
      %v763 = vpop.permute.xlu0 %762
      %764 = vrot.lane.b32.xlu0 %v745, 8
      %v765 = vpop.permute.xlu0 %764
      %766 = vrot.lane.b32.xlu0 %v746, 8
      %v767 = vpop.permute.xlu0 %766
      %768 = vrot.lane.b32.xlu0 %v747, 8
      %v769 = vpop.permute.xlu0 %768
      %770 = vrot.lane.b32.xlu0 %v748, 8
      %v771 = vpop.permute.xlu0 %770
      %772 = vrot.lane.b32.xlu0 %v749, 8
      %v773 = vpop.permute.xlu0 %772
      %v782 = vsel %vm698, %v690, %v759
      %v783 = vsel %vm699, %v691, %v761
      %v784 = vsel %vm700, %v692, %v763
      %v785 = vsel %vm701, %v693, %v765
      %v786 = vsel %vm702, %v694, %v767
      %v787 = vsel %vm703, %v695, %v769
      %v788 = vsel %vm704, %v696, %v771
      %v789 = vsel %vm705, %v697, %v773
      %790 = vst.msk [vmem:[#allocation2] sm:$0xff] %vm546, 0.0
      %vm791 = vcmask 58368
      %792 = vst.msk [vmem:[#allocation2 + $0x8] sm:$0x3] %vm791, 0.0
      %s793 = scalar_lea.vmem [#allocation2], 144
      %794 = vst.msk [vmem:[%s793] sm:$0xff] %vm546, 0.0
      %795 = vst.msk [vmem:[%s793 + $0x8] sm:$0x3] %vm791, 0.0
      %vm796 = vcmask 57344
      %797 = vst.msk [vmem:[#allocation2] sm:$0x1] %vm796, 0.0
      %798 = vst.msk [vmem:[#allocation2 + $0x10] sm:$0x1] %vm796, 0.0
      %799 = vst.msk [vmem:[#allocation2 + $0x20] sm:$0x1] %vm796, 0.0
      %800 = vst.msk [vmem:[#allocation2 + $0x30] sm:$0x1] %vm796, 0.0
      %801 = vst.msk [vmem:[#allocation2 + $0x40] sm:$0x1] %vm796, 0.0
      %802 = vst.msk [vmem:[#allocation2 + $0x50] sm:$0x1] %vm796, 0.0
      %803 = vst.msk [vmem:[#allocation2 + $0x60] sm:$0x1] %vm796, 0.0
      %804 = vst.msk [vmem:[#allocation2 + $0x70] sm:$0x1] %vm796, 0.0
      %805 = vst.msk [vmem:[#allocation2 + $0x80] sm:$0x1] %vm796, 0.0
      %806 = vst.msk [vmem:[#allocation2 + $0x90] sm:$0x1] %vm796, 0.0
      %807 = vst.msk [vmem:[#allocation2 + $0x9] sm:$0x1] %vm796, 0.0
      %808 = vst.msk [vmem:[#allocation2 + $0x19] sm:$0x1] %vm796, 0.0
      %809 = vst.msk [vmem:[#allocation2 + $0x29] sm:$0x1] %vm796, 0.0
      %810 = vst.msk [vmem:[#allocation2 + $0x39] sm:$0x1] %vm796, 0.0
      %811 = vst.msk [vmem:[#allocation2 + $0x49] sm:$0x1] %vm796, 0.0
      %812 = vst.msk [vmem:[#allocation2 + $0x59] sm:$0x1] %vm796, 0.0
      %813 = vst.msk [vmem:[#allocation2 + $0x69] sm:$0x1] %vm796, 0.0
      %814 = vst.msk [vmem:[#allocation2 + $0x79] sm:$0x1] %vm796, 0.0
      %815 = vst.msk [vmem:[#allocation2 + $0x89] sm:$0x1] %vm796, 0.0
      %816 = vst.msk [vmem:[#allocation2 + $0x99] sm:$0x1] %vm796, 0.0
      %825 = vrot.lane.b32.xlu0 %v782, 120
      %v826 = vpop.permute.xlu0 %825
      %827 = vrot.lane.b32.xlu0 %v783, 120
      %v828 = vpop.permute.xlu0 %827
      %829 = vrot.lane.b32.xlu0 %v784, 120
      %v830 = vpop.permute.xlu0 %829
      %831 = vrot.lane.b32.xlu0 %v785, 120
      %v832 = vpop.permute.xlu0 %831
      %833 = vrot.lane.b32.xlu0 %v786, 120
      %v834 = vpop.permute.xlu0 %833
      %835 = vrot.lane.b32.xlu0 %v787, 120
      %v836 = vpop.permute.xlu0 %835
      %837 = vrot.lane.b32.xlu0 %v788, 120
      %v838 = vpop.permute.xlu0 %837
      %839 = vrot.lane.b32.xlu0 %v789, 120
      %v840 = vpop.permute.xlu0 %839
      %s849 = scalar_lea.vmem [#allocation2], 16
      %850 = vst.msk [vmem:[%s849 + $0x1] sm:$0xff] %vm546, %v826
      %851 = vst.msk [vmem:[%s849 + $0x11] sm:$0xff] %vm546, %v828
      %852 = vst.msk [vmem:[%s849 + $0x21] sm:$0xff] %vm546, %v830
      %853 = vst.msk [vmem:[%s849 + $0x31] sm:$0xff] %vm546, %v832
      %854 = vst.msk [vmem:[%s849 + $0x41] sm:$0xff] %vm546, %v834
      %855 = vst.msk [vmem:[%s849 + $0x51] sm:$0xff] %vm546, %v836
      %856 = vst.msk [vmem:[%s849 + $0x61] sm:$0xff] %vm546, %v838
      %857 = vst.msk [vmem:[%s849 + $0x71] sm:$0xff] %vm546, %v840
      %v858 = vld [vmem:[#allocation2] sm:$0xff]
      %v859 = vld [vmem:[#allocation2 + $0x10] sm:$0xff]
      %v860 = vld [vmem:[#allocation2 + $0x20] sm:$0xff]
      %v861 = vld [vmem:[#allocation2 + $0x30] sm:$0xff]
      %v862 = vld [vmem:[#allocation2 + $0x40] sm:$0xff]
      %v863 = vld [vmem:[#allocation2 + $0x50] sm:$0xff]
      %v864 = vld [vmem:[#allocation2 + $0x60] sm:$0xff]
      %v865 = vld [vmem:[#allocation2 + $0x70] sm:$0xff]
      %v866 = vld [vmem:[#allocation2 + $0x1] sm:$0xff]
      %v867 = vld [vmem:[#allocation2 + $0x11] sm:$0xff]
      %v868 = vld [vmem:[#allocation2 + $0x21] sm:$0xff]
      %v869 = vld [vmem:[#allocation2 + $0x31] sm:$0xff]
      %v870 = vld [vmem:[#allocation2 + $0x41] sm:$0xff]
      %v871 = vld [vmem:[#allocation2 + $0x51] sm:$0xff]
      %v872 = vld [vmem:[#allocation2 + $0x61] sm:$0xff]
      %v873 = vld [vmem:[#allocation2 + $0x71] sm:$0xff]
      %v874 = vld [vmem:[#allocation2 + $0x2] sm:$0xff]
      %v875 = vld [vmem:[#allocation2 + $0x12] sm:$0xff]
      %v876 = vld [vmem:[#allocation2 + $0x22] sm:$0xff]
      %v877 = vld [vmem:[#allocation2 + $0x32] sm:$0xff]
      %v878 = vld [vmem:[#allocation2 + $0x42] sm:$0xff]
      %v879 = vld [vmem:[#allocation2 + $0x52] sm:$0xff]
      %v880 = vld [vmem:[#allocation2 + $0x62] sm:$0xff]
      %v881 = vld [vmem:[#allocation2 + $0x72] sm:$0xff]
      %v882 = vld [vmem:[%s849] sm:$0xff]
      %v883 = vld [vmem:[%s849 + $0x10] sm:$0xff]
      %v884 = vld [vmem:[%s849 + $0x20] sm:$0xff]
      %v885 = vld [vmem:[%s849 + $0x30] sm:$0xff]
      %v886 = vld [vmem:[%s849 + $0x40] sm:$0xff]
      %v887 = vld [vmem:[%s849 + $0x50] sm:$0xff]
      %v888 = vld [vmem:[%s849 + $0x60] sm:$0xff]
      %v889 = vld [vmem:[%s849 + $0x70] sm:$0xff]
      %v890 = vld [vmem:[%s849 + $0x1] sm:$0xff]
      %v891 = vld [vmem:[%s849 + $0x11] sm:$0xff]
      %v892 = vld [vmem:[%s849 + $0x21] sm:$0xff]
      %v893 = vld [vmem:[%s849 + $0x31] sm:$0xff]
      %v894 = vld [vmem:[%s849 + $0x41] sm:$0xff]
      %v895 = vld [vmem:[%s849 + $0x51] sm:$0xff]
      %v896 = vld [vmem:[%s849 + $0x61] sm:$0xff]
      %v897 = vld [vmem:[%s849 + $0x71] sm:$0xff]
      %v898 = vld [vmem:[%s849 + $0x2] sm:$0xff]
      %v899 = vld [vmem:[%s849 + $0x12] sm:$0xff]
      %v900 = vld [vmem:[%s849 + $0x22] sm:$0xff]
      %v901 = vld [vmem:[%s849 + $0x32] sm:$0xff]
      %v902 = vld [vmem:[%s849 + $0x42] sm:$0xff]
      %v903 = vld [vmem:[%s849 + $0x52] sm:$0xff]
      %v904 = vld [vmem:[%s849 + $0x62] sm:$0xff]
      %v905 = vld [vmem:[%s849 + $0x72] sm:$0xff]
      %s906 = scalar_lea.vmem [#allocation2], 32
      %v907 = vld [vmem:[%s906] sm:$0xff]
      %v908 = vld [vmem:[%s906 + $0x10] sm:$0xff]
      %v909 = vld [vmem:[%s906 + $0x20] sm:$0xff]
      %v910 = vld [vmem:[%s906 + $0x30] sm:$0xff]
      %v911 = vld [vmem:[%s906 + $0x40] sm:$0xff]
      %v912 = vld [vmem:[%s906 + $0x50] sm:$0xff]
      %v913 = vld [vmem:[%s906 + $0x60] sm:$0xff]
      %v914 = vld [vmem:[%s906 + $0x70] sm:$0xff]
      %v915 = vld [vmem:[%s906 + $0x1] sm:$0xff]
      %v916 = vld [vmem:[%s906 + $0x11] sm:$0xff]
      %v917 = vld [vmem:[%s906 + $0x21] sm:$0xff]
      %v918 = vld [vmem:[%s906 + $0x31] sm:$0xff]
      %v919 = vld [vmem:[%s906 + $0x41] sm:$0xff]
      %v920 = vld [vmem:[%s906 + $0x51] sm:$0xff]
      %v921 = vld [vmem:[%s906 + $0x61] sm:$0xff]
      %v922 = vld [vmem:[%s906 + $0x71] sm:$0xff]
      %v923 = vld [vmem:[%s906 + $0x2] sm:$0xff]
      %v924 = vld [vmem:[%s906 + $0x12] sm:$0xff]
      %v925 = vld [vmem:[%s906 + $0x22] sm:$0xff]
      %v926 = vld [vmem:[%s906 + $0x32] sm:$0xff]
      %v927 = vld [vmem:[%s906 + $0x42] sm:$0xff]
      %v928 = vld [vmem:[%s906 + $0x52] sm:$0xff]
      %v929 = vld [vmem:[%s906 + $0x62] sm:$0xff]
      %v930 = vld [vmem:[%s906 + $0x72] sm:$0xff]
      %939 = vrot.lane.b32.xlu0 %v866, 8
      %v940 = vpop.permute.xlu0 %939
      %941 = vrot.lane.b32.xlu0 %v867, 8
      %v942 = vpop.permute.xlu0 %941
      %943 = vrot.lane.b32.xlu0 %v868, 8
      %v944 = vpop.permute.xlu0 %943
      %945 = vrot.lane.b32.xlu0 %v869, 8
      %v946 = vpop.permute.xlu0 %945
      %947 = vrot.lane.b32.xlu0 %v870, 8
      %v948 = vpop.permute.xlu0 %947
      %949 = vrot.lane.b32.xlu0 %v871, 8
      %v950 = vpop.permute.xlu0 %949
      %951 = vrot.lane.b32.xlu0 %v872, 8
      %v952 = vpop.permute.xlu0 %951
      %953 = vrot.lane.b32.xlu0 %v873, 8
      %v954 = vpop.permute.xlu0 %953
      %971 = vrot.lane.b32.xlu0 %v874, 16
      %v972 = vpop.permute.xlu0 %971
      %973 = vrot.lane.b32.xlu0 %v875, 16
      %v974 = vpop.permute.xlu0 %973
      %975 = vrot.lane.b32.xlu0 %v876, 16
      %v976 = vpop.permute.xlu0 %975
      %977 = vrot.lane.b32.xlu0 %v877, 16
      %v978 = vpop.permute.xlu0 %977
      %979 = vrot.lane.b32.xlu0 %v878, 16
      %v980 = vpop.permute.xlu0 %979
      %981 = vrot.lane.b32.xlu0 %v879, 16
      %v982 = vpop.permute.xlu0 %981
      %983 = vrot.lane.b32.xlu0 %v880, 16
      %v984 = vpop.permute.xlu0 %983
      %985 = vrot.lane.b32.xlu0 %v881, 16
      %v986 = vpop.permute.xlu0 %985
      %1003 = vrot.lane.b32.xlu0 %v882, 24
      %v1004 = vpop.permute.xlu0 %1003
      %1005 = vrot.lane.b32.xlu0 %v883, 24
      %v1006 = vpop.permute.xlu0 %1005
      %1007 = vrot.lane.b32.xlu0 %v884, 24
      %v1008 = vpop.permute.xlu0 %1007
      %1009 = vrot.lane.b32.xlu0 %v885, 24
      %v1010 = vpop.permute.xlu0 %1009
      %1011 = vrot.lane.b32.xlu0 %v886, 24
      %v1012 = vpop.permute.xlu0 %1011
      %1013 = vrot.lane.b32.xlu0 %v887, 24
      %v1014 = vpop.permute.xlu0 %1013
      %1015 = vrot.lane.b32.xlu0 %v888, 24
      %v1016 = vpop.permute.xlu0 %1015
      %1017 = vrot.lane.b32.xlu0 %v889, 24
      %v1018 = vpop.permute.xlu0 %1017
      %1035 = vrot.lane.b32.xlu0 %v890, 32
      %v1036 = vpop.permute.xlu0 %1035
      %1037 = vrot.lane.b32.xlu0 %v891, 32
      %v1038 = vpop.permute.xlu0 %1037
      %1039 = vrot.lane.b32.xlu0 %v892, 32
      %v1040 = vpop.permute.xlu0 %1039
      %1041 = vrot.lane.b32.xlu0 %v893, 32
      %v1042 = vpop.permute.xlu0 %1041
      %1043 = vrot.lane.b32.xlu0 %v894, 32
      %v1044 = vpop.permute.xlu0 %1043
      %1045 = vrot.lane.b32.xlu0 %v895, 32
      %v1046 = vpop.permute.xlu0 %1045
      %1047 = vrot.lane.b32.xlu0 %v896, 32
      %v1048 = vpop.permute.xlu0 %1047
      %1049 = vrot.lane.b32.xlu0 %v897, 32
      %v1050 = vpop.permute.xlu0 %1049
      %1067 = vrot.lane.b32.xlu0 %v898, 40
      %v1068 = vpop.permute.xlu0 %1067
      %1069 = vrot.lane.b32.xlu0 %v899, 40
      %v1070 = vpop.permute.xlu0 %1069
      %1071 = vrot.lane.b32.xlu0 %v900, 40
      %v1072 = vpop.permute.xlu0 %1071
      %1073 = vrot.lane.b32.xlu0 %v901, 40
      %v1074 = vpop.permute.xlu0 %1073
      %1075 = vrot.lane.b32.xlu0 %v902, 40
      %v1076 = vpop.permute.xlu0 %1075
      %1077 = vrot.lane.b32.xlu0 %v903, 40
      %v1078 = vpop.permute.xlu0 %1077
      %1079 = vrot.lane.b32.xlu0 %v904, 40
      %v1080 = vpop.permute.xlu0 %1079
      %1081 = vrot.lane.b32.xlu0 %v905, 40
      %v1082 = vpop.permute.xlu0 %1081
      %1099 = vrot.lane.b32.xlu0 %v907, 48
      %v1100 = vpop.permute.xlu0 %1099
      %1101 = vrot.lane.b32.xlu0 %v908, 48
      %v1102 = vpop.permute.xlu0 %1101
      %1103 = vrot.lane.b32.xlu0 %v909, 48
      %v1104 = vpop.permute.xlu0 %1103
      %1105 = vrot.lane.b32.xlu0 %v910, 48
      %v1106 = vpop.permute.xlu0 %1105
      %1107 = vrot.lane.b32.xlu0 %v911, 48
      %v1108 = vpop.permute.xlu0 %1107
      %1109 = vrot.lane.b32.xlu0 %v912, 48
      %v1110 = vpop.permute.xlu0 %1109
      %1111 = vrot.lane.b32.xlu0 %v913, 48
      %v1112 = vpop.permute.xlu0 %1111
      %1113 = vrot.lane.b32.xlu0 %v914, 48
      %v1114 = vpop.permute.xlu0 %1113
      %1131 = vrot.lane.b32.xlu0 %v915, 56
      %v1132 = vpop.permute.xlu0 %1131
      %1133 = vrot.lane.b32.xlu0 %v916, 56
      %v1134 = vpop.permute.xlu0 %1133
      %1135 = vrot.lane.b32.xlu0 %v917, 56
      %v1136 = vpop.permute.xlu0 %1135
      %1137 = vrot.lane.b32.xlu0 %v918, 56
      %v1138 = vpop.permute.xlu0 %1137
      %1139 = vrot.lane.b32.xlu0 %v919, 56
      %v1140 = vpop.permute.xlu0 %1139
      %1141 = vrot.lane.b32.xlu0 %v920, 56
      %v1142 = vpop.permute.xlu0 %1141
      %1143 = vrot.lane.b32.xlu0 %v921, 56
      %v1144 = vpop.permute.xlu0 %1143
      %1145 = vrot.lane.b32.xlu0 %v922, 56
      %v1146 = vpop.permute.xlu0 %1145
      %1163 = vrot.lane.b32.xlu0 %v923, 64
      %v1164 = vpop.permute.xlu0 %1163
      %1165 = vrot.lane.b32.xlu0 %v924, 64
      %v1166 = vpop.permute.xlu0 %1165
      %1167 = vrot.lane.b32.xlu0 %v925, 64
      %v1168 = vpop.permute.xlu0 %1167
      %1169 = vrot.lane.b32.xlu0 %v926, 64
      %v1170 = vpop.permute.xlu0 %1169
      %1171 = vrot.lane.b32.xlu0 %v927, 64
      %v1172 = vpop.permute.xlu0 %1171
      %1173 = vrot.lane.b32.xlu0 %v928, 64
      %v1174 = vpop.permute.xlu0 %1173
      %1175 = vrot.lane.b32.xlu0 %v929, 64
      %v1176 = vpop.permute.xlu0 %1175
      %1177 = vrot.lane.b32.xlu0 %v930, 64
      %v1178 = vpop.permute.xlu0 %1177
      %v1187 = vsel %vm546, %v858, %v940
      %v1188 = vsel %vm546, %v859, %v942
      %v1189 = vsel %vm546, %v860, %v944
      %v1190 = vsel %vm546, %v861, %v946
      %v1191 = vsel %vm546, %v862, %v948
      %v1192 = vsel %vm546, %v863, %v950
      %v1193 = vsel %vm546, %v864, %v952
      %v1194 = vsel %vm546, %v865, %v954
      %v1195 = vsel %vm564, %v1187, %v972
      %v1196 = vsel %vm564, %v1188, %v974
      %v1197 = vsel %vm564, %v1189, %v976
      %v1198 = vsel %vm564, %v1190, %v978
      %v1199 = vsel %vm564, %v1191, %v980
      %v1200 = vsel %vm564, %v1192, %v982
      %v1201 = vsel %vm564, %v1193, %v984
      %v1202 = vsel %vm564, %v1194, %v986
      %v1203 = vsel %vm582, %v1195, %v1004
      %v1204 = vsel %vm582, %v1196, %v1006
      %v1205 = vsel %vm582, %v1197, %v1008
      %v1206 = vsel %vm582, %v1198, %v1010
      %v1207 = vsel %vm582, %v1199, %v1012
      %v1208 = vsel %vm582, %v1200, %v1014
      %v1209 = vsel %vm582, %v1201, %v1016
      %v1210 = vsel %vm582, %v1202, %v1018
      %v1211 = vsel %vm600, %v1203, %v1036
      %v1212 = vsel %vm600, %v1204, %v1038
      %v1213 = vsel %vm600, %v1205, %v1040
      %v1214 = vsel %vm600, %v1206, %v1042
      %v1215 = vsel %vm600, %v1207, %v1044
      %v1216 = vsel %vm600, %v1208, %v1046
      %v1217 = vsel %vm600, %v1209, %v1048
      %v1218 = vsel %vm600, %v1210, %v1050
      %vm1219 = vcmask 326656
      %v1220 = vsel %vm1219, %v1211, %v1068
      %v1221 = vsel %vm1219, %v1212, %v1070
      %v1222 = vsel %vm1219, %v1213, %v1072
      %v1223 = vsel %vm1219, %v1214, %v1074
      %v1224 = vsel %vm1219, %v1215, %v1076
      %v1225 = vsel %vm1219, %v1216, %v1078
      %v1226 = vsel %vm1219, %v1217, %v1080
      %v1227 = vsel %vm1219, %v1218, %v1082
      %vm1228 = vcmask 392192
      %v1229 = vsel %vm1228, %v1220, %v1100
      %v1230 = vsel %vm1228, %v1221, %v1102
      %v1231 = vsel %vm1228, %v1222, %v1104
      %v1232 = vsel %vm1228, %v1223, %v1106
      %v1233 = vsel %vm1228, %v1224, %v1108
      %v1234 = vsel %vm1228, %v1225, %v1110
      %v1235 = vsel %vm1228, %v1226, %v1112
      %v1236 = vsel %vm1228, %v1227, %v1114
      %vm1237 = vcmask 457728
      %v1238 = vsel %vm1237, %v1229, %v1132
      %v1239 = vsel %vm1237, %v1230, %v1134
      %v1240 = vsel %vm1237, %v1231, %v1136
      %v1241 = vsel %vm1237, %v1232, %v1138
      %v1242 = vsel %vm1237, %v1233, %v1140
      %v1243 = vsel %vm1237, %v1234, %v1142
      %v1244 = vsel %vm1237, %v1235, %v1144
      %v1245 = vsel %vm1237, %v1236, %v1146
      %vm1246 = vcmask 523264
      %v1247 = vsel %vm1246, %v1238, %v1164
      %v1248 = vsel %vm1246, %v1239, %v1166
      %v1249 = vsel %vm1246, %v1240, %v1168
      %v1250 = vsel %vm1246, %v1241, %v1170
      %v1251 = vsel %vm1246, %v1242, %v1172
      %v1252 = vsel %vm1246, %v1243, %v1174
      %v1253 = vsel %vm1246, %v1244, %v1176
      %v1254 = vsel %vm1246, %v1245, %v1178
      %v1255 = vld [vmem:[%s4] sm:$0xff]
      %v1256 = vld [vmem:[%s4 + $0x8] sm:$0xff]
      %v1257 = vld [vmem:[%s4 + $0x10] sm:$0xff]
      %v1258 = vld [vmem:[%s4 + $0x18] sm:$0xff]
      %v1259 = vld [vmem:[%s4 + $0x20] sm:$0xff]
      %v1260 = vld [vmem:[%s4 + $0x28] sm:$0xff]
      %v1261 = vld [vmem:[%s4 + $0x30] sm:$0xff]
      %v1262 = vld [vmem:[%s4 + $0x38] sm:$0xff]
      %v1263 = vld [vmem:[%s4 + $0x40] sm:$0xff]
      %v1264 = vld [vmem:[%s5] sm:$0x1]
      %v1266 = vperm.slane %v1264, 0
      %vm1268 = vcmask 588800
      %v1270 = vsel %vm1268, %v1247, 0
      %v1273 = vsel %vm1268, %v1248, 0
      %v1276 = vsel %vm1268, %v1249, 0
      %v1279 = vsel %vm1268, %v1250, 0
      %v1282 = vsel %vm1268, %v1251, 0
      %v1285 = vsel %vm1268, %v1252, 0
      %v1288 = vsel %vm1268, %v1253, 0
      %v1291 = vsel %vm1268, %v1254, 0
      %1293 = vmatpush.msra.mxu0 0.0
      %1294 = vmatpush.msra.mxu0 0.0
      %1295 = vmatpush.msra.mxu0 0.0
      %1296 = vmatpush.msra.mxu0 0.0
      %1297 = vmatpush.msra.mxu0 0.0
      %1298 = vmatpush.msra.mxu0 0.0
      %1299 = vmatpush.msra.mxu0 0.0
      %1300 = vmatpush.msra.mxu0 %v1263
      %1301 = vmatpush.msra.mxu0 %v1262
      %1302 = vmatpush.msra.mxu0 %v1261
      %1303 = vmatpush.msra.mxu0 %v1260
      %1304 = vmatpush.msra.mxu0 %v1259
      %1305 = vmatpush.msra.mxu0 %v1258
      %1306 = vmatpush.msra.mxu0 %v1257
      %1307 = vmatpush.msra.mxu0 %v1256
      %1308 = vmatpush.msra.mxu0 %v1255
      %1309 = vmatmul.f32.gmra.mxu0 %v1270
      %v1310 = vpop.f32.mrf.mxu0
      %v1311 = vadd.f32 %v1266, %v1310
      %1312 = vmatmul.f32.gmra.mxu0 %v1273
      %v1313 = vpop.f32.mrf.mxu0
      %v1314 = vadd.f32 %v1266, %v1313
      %1315 = vmatmul.f32.gmra.mxu0 %v1276
      %v1316 = vpop.f32.mrf.mxu0
      %v1317 = vadd.f32 %v1266, %v1316
      %1318 = vmatmul.f32.gmra.mxu0 %v1279
      %v1319 = vpop.f32.mrf.mxu0
      %v1320 = vadd.f32 %v1266, %v1319
      %1321 = vmatmul.f32.gmra.mxu0 %v1282
      %v1322 = vpop.f32.mrf.mxu0
      %v1323 = vadd.f32 %v1266, %v1322
      %1324 = vmatmul.f32.gmra.mxu0 %v1285
      %v1325 = vpop.f32.mrf.mxu0
      %v1326 = vadd.f32 %v1266, %v1325
      %1327 = vmatmul.f32.gmra.mxu0 %v1288
      %v1328 = vpop.f32.mrf.mxu0
      %v1329 = vadd.f32 %v1266, %v1328
      %1330 = vmatmul.f32.gmra.mxu0 %v1291
      %v1331 = vpop.f32.mrf.mxu0
      %v1332 = vadd.f32 %v1266, %v1331
      %1333 = vdwg.mxu0
      %v1334 = vsel %vm546, %v1311, 0.0
      %v1335 = vsel %vm546, %v1314, 0.0
      %v1336 = vadd.f32 %v1334, %v1335
      %v1337 = vsel %vm546, %v1317, 0.0
      %v1338 = vadd.f32 %v1336, %v1337
      %v1339 = vsel %vm546, %v1320, 0.0
      %v1340 = vadd.f32 %v1338, %v1339
      %v1341 = vsel %vm546, %v1323, 0.0
      %v1342 = vadd.f32 %v1340, %v1341
      %v1343 = vsel %vm546, %v1326, 0.0
      %v1344 = vadd.f32 %v1342, %v1343
      %v1345 = vsel %vm546, %v1329, 0.0
      %v1346 = vadd.f32 %v1344, %v1345
      %v1347 = vsel %vm546, %v1332, 0.0
      %v1348 = vadd.f32 %v1346, %v1347
      %v1349 = vrot.slane %v1348, 4
      %v1350 = vadd.f32 %v1348, %v1349
      %v1351 = vrot.slane %v1350, 2
      %v1352 = vadd.f32 %v1350, %v1351
      %v1353 = vrot.slane %v1352, 1
      %v1354 = vadd.f32 %v1352, %v1353
      %v1355 = vmul.f32 %v1354, 0.015625
      %v1356 = vld [vmem:[%s6] sm:$0xff]
      %v1358 = vsel %vm546, %v1355, 0
      %1360 = vmatpush.msra.mxu0 0.0
      %1361 = vmatpush.msra.mxu0 0.0
      %1362 = vmatpush.msra.mxu0 0.0
      %1363 = vmatpush.msra.mxu0 0.0
      %1364 = vmatpush.msra.mxu0 0.0
      %1365 = vmatpush.msra.mxu0 0.0
      %1366 = vmatpush.msra.mxu0 0.0
      %1367 = vmatpush.msra.mxu0 0.0
      %1368 = vmatpush.msra.mxu0 0.0
      %1369 = vmatpush.msra.mxu0 0.0
      %1370 = vmatpush.msra.mxu0 0.0
      %1371 = vmatpush.msra.mxu0 0.0
      %1372 = vmatpush.msra.mxu0 0.0
      %1373 = vmatpush.msra.mxu0 0.0
      %1374 = vmatpush.msra.mxu0 0.0
      %1375 = vmatpush.msra.mxu0 %v1356
      %1376 = vmatmul.f32.gmra.mxu0 %v1358
      %v1377 = vpop.f32.mrf.mxu0
      %v1378 = vadd.f32 0.0, %v1377
      %1379 = vdwg.mxu0
      %vm1380 = vcmp.ge.f32.partialorder %v1378, 0.0
      %v1381 = vld [vmem:[#allocation3] sm:$0x1]
      %v1383 = vperm.slane %v1381, 0
      %1384 = vset.pattern.permute.xlu0 0
      %1385 = vperm.xlu0 %1384, %v1383
      %v1386 = vpop.permute.xlu0 %1385
      %v1388 = vmul.f32 %v1386, %v1378
      %v1389 = vsel %vm1380, %v1378, %v1388
      %v1390 = vld [vmem:[%s8] sm:$0xff]
      %v1391 = vld [vmem:[%s8 + $0x8] sm:$0xff]
      %v1393 = vsel %vm564, %v1389, 0
      %1395 = vmatpush.msra.mxu0 0.0
      %1396 = vmatpush.msra.mxu0 0.0
      %1397 = vmatpush.msra.mxu0 0.0
      %1398 = vmatpush.msra.mxu0 0.0
      %1399 = vmatpush.msra.mxu0 0.0
      %1400 = vmatpush.msra.mxu0 0.0
      %1401 = vmatpush.msra.mxu0 0.0
      %1402 = vmatpush.msra.mxu0 0.0
      %1403 = vmatpush.msra.mxu0 0.0
      %1404 = vmatpush.msra.mxu0 0.0
      %1405 = vmatpush.msra.mxu0 0.0
      %1406 = vmatpush.msra.mxu0 0.0
      %1407 = vmatpush.msra.mxu0 0.0
      %1408 = vmatpush.msra.mxu0 0.0
      %1409 = vmatpush.msra.mxu0 %v1391
      %1410 = vmatpush.msra.mxu0 %v1390
      %1411 = vmatmul.f32.gmra.mxu0 %v1393
      %v1412 = vpop.f32.mrf.mxu0
      %v1413 = vadd.f32 0.0, %v1412
      %1414 = vdwg.mxu0
      %v1415 = vxor.u32 %v1413, 2147483648
      %v1416 = vmul.f32 %v1415, 1.442695
      %v1417 = vpow.pop %v1416
      %v1418 = vadd.f32 %v1417, 1.0
      %v1419 = vrcp.pop %v1418
      %v1420 = vmul.f32 %v1418, %v1419
      %v1421 = vsub.f32 1.0, %v1420
      %v1422 = vmul.f32 %v1419, %v1421
      %v1423 = vadd.f32 %v1419, %v1422
      %vm1424 = vweird.f32 %v1418
      %vm1425 = vweird.f32 %v1419
      %vm1426 = vmor %vm1424, %vm1425
      %v1427 = vsel %vm1426, %v1419, %v1423
      %v1428 = vand.u32 2147483647, %v1418
      %vm1429 = vcmp.eq.f32.partialorder %v1428, 8.507059e+37
      %v1430 = vand.u32 %v1418, 2147483648
      %v1431 = vor.u32 1.1754944e-38, %v1430
      %v1432 = vsel %vm1429, %v1431, %v1427
      %v1433 = vmul.f32 1.0, %v1432
      %v1434 = vperm.slane %v1433, 0
      %v1435 = vmul.f32 %v1311, %v1434
      %v1436 = vmul.f32 %v1314, %v1434
      %v1437 = vmul.f32 %v1317, %v1434
      %v1438 = vmul.f32 %v1320, %v1434
      %v1439 = vmul.f32 %v1323, %v1434
      %v1440 = vmul.f32 %v1326, %v1434
      %v1441 = vmul.f32 %v1329, %v1434
      %v1442 = vmul.f32 %v1332, %v1434
      %v1443 = vadd.f32 %v1435, %v661
      %v1444 = vadd.f32 %v1436, %v664
      %v1445 = vadd.f32 %v1437, %v667
      %v1446 = vadd.f32 %v1438, %v670
      %v1447 = vadd.f32 %v1439, %v673
      %v1448 = vadd.f32 %v1440, %v676
      %v1449 = vadd.f32 %v1441, %v679
      %v1450 = vadd.f32 %v1442, %v682
      %vm1451 = vcmp.ge.f32.partialorder %v1443, 0.0
      %vm1452 = vcmp.ge.f32.partialorder %v1444, 0.0
      %vm1453 = vcmp.ge.f32.partialorder %v1445, 0.0
      %vm1454 = vcmp.ge.f32.partialorder %v1446, 0.0
      %vm1455 = vcmp.ge.f32.partialorder %v1447, 0.0
      %vm1456 = vcmp.ge.f32.partialorder %v1448, 0.0
      %vm1457 = vcmp.ge.f32.partialorder %v1449, 0.0
      %vm1458 = vcmp.ge.f32.partialorder %v1450, 0.0
      %v1459 = vld [vmem:[%s9] sm:$0x1]
      %v1461 = vperm.slane %v1459, 0
      %v1463 = vmul.f32 %v1461, %v1443
      %v1464 = vmul.f32 %v1461, %v1444
      %v1465 = vmul.f32 %v1461, %v1445
      %v1466 = vmul.f32 %v1461, %v1446
      %v1467 = vmul.f32 %v1461, %v1447
      %v1468 = vmul.f32 %v1461, %v1448
      %v1469 = vmul.f32 %v1461, %v1449
      %v1470 = vmul.f32 %v1461, %v1450
      %v1471 = vsel %vm1451, %v1443, %v1463
      %v1472 = vsel %vm1452, %v1444, %v1464
      %v1473 = vsel %vm1453, %v1445, %v1465
      %v1474 = vsel %vm1454, %v1446, %v1466
      %v1475 = vsel %vm1455, %v1447, %v1467
      %v1476 = vsel %vm1456, %v1448, %v1468
      %v1477 = vsel %vm1457, %v1449, %v1469
      %v1478 = vsel %vm1458, %v1450, %v1470
      %1479 = vst.msk [vmem:[%s361] sm:$0xff] %vm546, %v1471
      %1480 = vst.msk [vmem:[%s361 + $0x8] sm:$0xff] %vm546, %v1472
      %1481 = vst.msk [vmem:[%s361 + $0x10] sm:$0xff] %vm546, %v1473
      %1482 = vst.msk [vmem:[%s361 + $0x18] sm:$0xff] %vm546, %v1474
      %1483 = vst.msk [vmem:[%s361 + $0x20] sm:$0xff] %vm546, %v1475
      %1484 = vst.msk [vmem:[%s361 + $0x28] sm:$0xff] %vm546, %v1476
      %1485 = vst.msk [vmem:[%s361 + $0x30] sm:$0xff] %vm546, %v1477
      %1486 = vst.msk [vmem:[%s361 + $0x38] sm:$0xff] %vm546, %v1478
      %p1487 = scmp.lt.s32.totalorder %s23, 1
      %s1488 = scalar_select %p1487, %s23, 1
      %s1489 = smul.addr %s1488, 8
      %s1490 = smul.addr %s1489, 8
      %s1491 = scalar_lea.vmem %s10, %s1490
      // Predicated region
      $region61: #{tpu_custom_call.1} parent=59 // pred_check
        %p1492 = pneg %p256
      $region62: #{tpu_custom_call.1} parent=59 // pred_check_branch
        %1494 = sbr.rel (%p1492) target = $region64
      $region63: #{tpu_custom_call.1} parent=59 // pred_region
        _
      $region64: #{tpu_custom_call.1} parent=59 // pred_fallthru
        _
    $region60: #{tpu_custom_call.1} parent=5 // pred_fallthru
      _
    %p1495 = scmp.le.s32.totalorder 2, %s18
    // Predicated region
    $region65: #{tpu_custom_call.1} parent=5 // pred_check
      %p1496 = pneg %p1495
    $region66: #{tpu_custom_call.1} parent=5 // pred_check_branch
      %1498 = sbr.rel (%p1496) target = $region68
    $region67: #{tpu_custom_call.1} parent=5 // pred_region
      %s1499 = ssub.s32 %s18, 2
      // Predicated region
      $region69: #{tpu_custom_call.1} parent=67 // pred_check
        %p1500 = pneg %p262
      $region70: #{tpu_custom_call.1} parent=67 // pred_check_branch
        %1502 = sbr.rel (%p1500) target = $region72
      $region71: #{tpu_custom_call.1} parent=67 // pred_region
        %p1503 = scmp.lt.s32.totalorder %s24, 1
        %s1504 = scalar_select %p1503, %s24, 1
        %s1505 = smul.addr %s1504, 8
        %s1506 = smul.addr %s1505, 8
        %s1507 = scalar_lea.vmem %s10, %s1506
      $region72: #{tpu_custom_call.1} parent=67 // pred_fallthru
        _
    $region68: #{tpu_custom_call.1} parent=5 // pred_fallthru
      _
  $region6: #{tpu_custom_call.1} parent=0 // loop_footer
    %s22 = sadd.s32 1, %s18
  $region7: #{tpu_custom_call.1} parent=0 // loop_footer_branch
    %17 = sbr.rel target = $region3
  $region8: #{tpu_custom_call.1} parent=0 // loop_exit
    _

</llo_original>
